<compile_context>
chip_gen: v7x
topology: tpu7x:2x2x1
jax: 0.10.0
libtpu: 0.0.40
codegen_flags: <defaults>
</compile_context>

<pallas_src>
import functools

import jax
import jax.numpy as jnp
from jax.experimental import pallas as pl
from jax.experimental.pallas import tpu as pltpu


INPUT_DIM = 100
HIDDEN_DIM = 256
EMBED_DIM = 64


def model_embedder_kernel(
    x_ref,
    w1_ref, b1_ref,   # encoder: input_dim -> hidden
    w2_ref, b2_ref,   # encoder: hidden    -> hidden // 2
    w3_ref, b3_ref,   # encoder: hidden//2 -> embed
    w4_ref, b4_ref,   # decoder: embed     -> hidden // 2
    w5_ref, b5_ref,   # decoder: hidden//2 -> hidden
    w6_ref, b6_ref,   # decoder: hidden    -> input_dim
    emb_ref, rec_ref,
):
    """One batch tile through all six Linear(+ReLU) layers, fully fused."""

    def layer(h_bf16, w_ref, b_ref, relu):
        # bf16 operands into the MXU, f32 accumulation; bias-add / ReLU in f32
        # (v5e VPU has no bf16 elementwise path).
        y = jnp.dot(h_bf16, w_ref[...], preferred_element_type=jnp.float32)
        y = y + b_ref[...]
        if relu:
            y = jnp.maximum(y, 0.0)
        return y

    # Carry bf16 between layers: halves inter-layer VMEM/vreg ld/st traffic.
    h = x_ref[...].astype(jnp.bfloat16)

    # Encoder (Dropout is identity in eval mode).
    h = layer(h, w1_ref, b1_ref, relu=True).astype(jnp.bfloat16)
    h = layer(h, w2_ref, b2_ref, relu=True).astype(jnp.bfloat16)
    emb = layer(h, w3_ref, b3_ref, relu=False)
    emb_ref[...] = emb.astype(emb_ref.dtype)

    # Decoder.
    d = emb.astype(jnp.bfloat16)
    d = layer(d, w4_ref, b4_ref, relu=True).astype(jnp.bfloat16)
    d = layer(d, w5_ref, b5_ref, relu=True).astype(jnp.bfloat16)
    rec = layer(d, w6_ref, b6_ref, relu=False)
    rec_ref[...] = rec.astype(rec_ref.dtype)


def make_params(key, input_dim=INPUT_DIM, hidden_dim=HIDDEN_DIM, embed_dim=EMBED_DIM):
    """torch.nn.Linear-style init. Weights stored [in, out] (transposed vs torch)."""
    dims = [
        (input_dim, hidden_dim),        # enc L1
        (hidden_dim, hidden_dim // 2),  # enc L2
        (hidden_dim // 2, embed_dim),   # enc L3
        (embed_dim, hidden_dim // 2),   # dec L1
        (hidden_dim // 2, hidden_dim),  # dec L2
        (hidden_dim, input_dim),        # dec L3
    ]
    params = []
    for i, (fan_in, fan_out) in enumerate(dims):
        kw, kb = jax.random.split(jax.random.fold_in(key, i))
        bound = float(fan_in) ** -0.5
        w = jax.random.uniform(kw, (fan_in, fan_out), jnp.float32, -bound, bound)
        b = jax.random.uniform(kb, (1, fan_out), jnp.float32, -bound, bound)
        params.append((w, b))
    return params


@functools.partial(jax.jit, static_argnames=("batch_tile", "out_dtype"))
def model_embedder_forward(x, params, *, batch_tile=1024, out_dtype=jnp.bfloat16):
    assert batch_tile % 8 == 0, "batch_tile must be a multiple of the sublane size (8)"
    B, input_dim = x.shape
    embed_dim = params[2][0].shape[1]

    # Batch tile: either batch_tile (multiple of 8) when it tiles B, or the
    # full batch (any size; a full-extent block dim is always legal).
    bt = batch_tile if B >= batch_tile else B
    grid = pl.cdiv(B, bt)   # ragged last block is masked by Pallas

    # Weights to bf16 (halves their DMA bytes, feeds the bf16 MXU path);
    # biases stay f32 (added after f32 accumulation).  One-time, tiny cost.
    flat_params = []
    for w, b in params:
        flat_params += [w.astype(jnp.bfloat16), b]

    # Grid-invariant full-array blocks: fetched once, resident in VMEM.
    param_specs = [pl.BlockSpec(p.shape, lambda i: (0, 0)) for p in flat_params]

    in_specs = [pl.BlockSpec((bt, input_dim), lambda i: (i, 0))] + param_specs
    out_specs = [
        pl.BlockSpec((bt, embed_dim), lambda i: (i, 0)),
        pl.BlockSpec((bt, input_dim), lambda i: (i, 0)),
    ]
    out_shape = (
        jax.ShapeDtypeStruct((B, embed_dim), out_dtype),
        jax.ShapeDtypeStruct((B, input_dim), out_dtype),
    )

    emb, rec = pl.pallas_call(
        model_embedder_kernel,
        out_shape=out_shape,
        grid_spec=pltpu.PrefetchScalarGridSpec(
            num_scalar_prefetch=0,
            grid=(grid,),
            in_specs=in_specs,
            out_specs=out_specs,
        ),
        compiler_params=pltpu.CompilerParams(
            dimension_semantics=("parallel",),
        ),
    )(x, *flat_params)
    return emb, rec


def reference_forward(x, params, *, mirror_kernel_precision=True):
    """Plain-JAX reference.

    mirror_kernel_precision=True reproduces the kernel's bf16-operand /
    f32-accumulation math; False is the exact f32 math of the PyTorch module.
    """
    cast = (lambda a: a.astype(jnp.bfloat16)) if mirror_kernel_precision else (lambda a: a)

    def lin(h, w, b, relu):
        y = jnp.dot(cast(h), cast(w), preferred_element_type=jnp.float32) + b
        return jnp.maximum(y, 0.0) if relu else y

    (w1, b1), (w2, b2), (w3, b3), (w4, b4), (w5, b5), (w6, b6) = params
    h = lin(x, w1, b1, True)
    h = lin(h, w2, b2, True)
    emb = lin(h, w3, b3, False)
    d = lin(emb, w4, b4, True)
    d = lin(d, w5, b5, True)
    rec = lin(d, w6, b6, False)
    return emb, rec


if __name__ == "__main__":
    key = jax.random.PRNGKey(0)
    k_x, k_p = jax.random.split(key)

    # Small test: 200 rows with a 128-row tile -> grid of 2 (exercises the
    # ragged, Pallas-masked last batch block and both v7x TensorCores).
    B = 200
    x = jax.random.normal(k_x, (B, INPUT_DIM), jnp.float32)
    params = make_params(k_p)

    emb, rec = model_embedder_forward(x, params, batch_tile=128)
    emb, rec = jax.block_until_ready((emb, rec))

    assert emb.shape == (B, EMBED_DIM) and emb.dtype == jnp.bfloat16
    assert rec.shape == (B, INPUT_DIM) and rec.dtype == jnp.bfloat16

    emb32 = emb.astype(jnp.float32)
    rec32 = rec.astype(jnp.float32)

    # Tight check vs. a reference mirroring the kernel's bf16-operand math.
    emb_ref, rec_ref = reference_forward(x, params, mirror_kernel_precision=True)
    assert jnp.allclose(emb32, emb_ref, atol=2e-2, rtol=2e-2)
    assert jnp.allclose(rec32, rec_ref, atol=2e-2, rtol=2e-2)

    # Loose check vs. the exact f32 module math (documents the bf16 deviation).
    emb_f32, rec_f32 = reference_forward(x, params, mirror_kernel_precision=False)
    assert jnp.allclose(emb32, emb_f32, atol=1e-1, rtol=1e-1)
    assert jnp.allclose(rec32, rec_f32, atol=1e-1, rtol=1e-1)

    print("KERNEL_OK")
</pallas_src>

<mosaic_0001>
module attributes {stable_mosaic.version = 11 : i64} {
  func.func @model_embedder_kernel(%arg0: i32, %arg1: memref<128x100xf32, #tpu.memory_space<vmem>>, %arg2: memref<100x256xbf16, #tpu.memory_space<vmem>>, %arg3: memref<1x256xf32, #tpu.memory_space<vmem>>, %arg4: memref<256x128xbf16, #tpu.memory_space<vmem>>, %arg5: memref<1x128xf32, #tpu.memory_space<vmem>>, %arg6: memref<128x64xbf16, #tpu.memory_space<vmem>>, %arg7: memref<1x64xf32, #tpu.memory_space<vmem>>, %arg8: memref<64x128xbf16, #tpu.memory_space<vmem>>, %arg9: memref<1x128xf32, #tpu.memory_space<vmem>>, %arg10: memref<128x256xbf16, #tpu.memory_space<vmem>>, %arg11: memref<1x256xf32, #tpu.memory_space<vmem>>, %arg12: memref<256x100xbf16, #tpu.memory_space<vmem>>, %arg13: memref<1x100xf32, #tpu.memory_space<vmem>>, %arg14: memref<128x64xbf16, #tpu.memory_space<vmem>>, %arg15: memref<128x100xbf16, #tpu.memory_space<vmem>>) attributes {dimension_semantics = [#tpu.dimension_semantics<parallel>], iteration_bounds = array<i64: 2>, scalar_prefetch = 0 : i64, scratch_operands = 0 : i64, tpu.core_type = #tpu.core_type<tc>, window_params = [{transform_indices = @transform_0, window_bounds = array<i64: 128, 100>}, {pipeline_mode = #tpu.pipeline_mode<synchronous>, transform_indices = @transform_1, window_bounds = array<i64: 100, 256>}, {pipeline_mode = #tpu.pipeline_mode<synchronous>, transform_indices = @transform_2, window_bounds = array<i64: 1, 256>}, {pipeline_mode = #tpu.pipeline_mode<synchronous>, transform_indices = @transform_3, window_bounds = array<i64: 256, 128>}, {pipeline_mode = #tpu.pipeline_mode<synchronous>, transform_indices = @transform_4, window_bounds = array<i64: 1, 128>}, {pipeline_mode = #tpu.pipeline_mode<synchronous>, transform_indices = @transform_5, window_bounds = array<i64: 128, 64>}, {pipeline_mode = #tpu.pipeline_mode<synchronous>, transform_indices = @transform_6, window_bounds = array<i64: 1, 64>}, {pipeline_mode = #tpu.pipeline_mode<synchronous>, transform_indices = @transform_7, window_bounds = array<i64: 64, 128>}, {pipeline_mode = #tpu.pipeline_mode<synchronous>, transform_indices = @transform_8, window_bounds = array<i64: 1, 128>}, {pipeline_mode = #tpu.pipeline_mode<synchronous>, transform_indices = @transform_9, window_bounds = array<i64: 128, 256>}, {pipeline_mode = #tpu.pipeline_mode<synchronous>, transform_indices = @transform_10, window_bounds = array<i64: 1, 256>}, {pipeline_mode = #tpu.pipeline_mode<synchronous>, transform_indices = @transform_11, window_bounds = array<i64: 256, 100>}, {pipeline_mode = #tpu.pipeline_mode<synchronous>, transform_indices = @transform_12, window_bounds = array<i64: 1, 100>}, {transform_indices = @transform_13, window_bounds = array<i64: 128, 64>}, {transform_indices = @transform_14, window_bounds = array<i64: 128, 100>}]} {
    %c0 = arith.constant 0 : index
    %c0_0 = arith.constant 0 : index
    %0 = vector.load %arg1[%c0, %c0_0] : memref<128x100xf32, #tpu.memory_space<vmem>>, vector<128x100xf32>
    %1 = arith.truncf %0 : vector<128x100xf32> to vector<128x100xbf16>
    %c0_1 = arith.constant 0 : index
    %c0_2 = arith.constant 0 : index
    %2 = vector.load %arg2[%c0_1, %c0_2] : memref<100x256xbf16, #tpu.memory_space<vmem>>, vector<100x256xbf16>
    %cst = arith.constant dense<0.000000e+00> : vector<128x256xf32>
    %3 = tpu.matmul %1, %2, %cst {dimension_numbers = #tpu.dot_dimension_numbers<[1], [0], [0], [1], [0, 0, 1, 1], [], []>} : vector<128x100xbf16>, vector<100x256xbf16>, vector<128x256xf32> -> vector<128x256xf32>
    %c0_3 = arith.constant 0 : index
    %c0_4 = arith.constant 0 : index
    %4 = vector.load %arg3[%c0_3, %c0_4] : memref<1x256xf32, #tpu.memory_space<vmem>>, vector<1x256xf32>
    %5 = vector.broadcast %4 : vector<1x256xf32> to vector<128x256xf32>
    %6 = arith.addf %3, %5 : vector<128x256xf32>
    %cst_5 = arith.constant 0.000000e+00 : f32
    %7 = vector.broadcast %cst_5 : f32 to vector<128x256xf32>
    %8 = arith.maximumf %6, %7 : vector<128x256xf32>
    %9 = arith.truncf %8 : vector<128x256xf32> to vector<128x256xbf16>
    %c0_6 = arith.constant 0 : index
    %c0_7 = arith.constant 0 : index
    %10 = vector.load %arg4[%c0_6, %c0_7] : memref<256x128xbf16, #tpu.memory_space<vmem>>, vector<256x128xbf16>
    %cst_8 = arith.constant dense<0.000000e+00> : vector<128x128xf32>
    %11 = tpu.matmul %9, %10, %cst_8 {dimension_numbers = #tpu.dot_dimension_numbers<[1], [0], [0], [1], [0, 0, 1, 1], [], []>} : vector<128x256xbf16>, vector<256x128xbf16>, vector<128x128xf32> -> vector<128x128xf32>
    %c0_9 = arith.constant 0 : index
    %c0_10 = arith.constant 0 : index
    %12 = vector.load %arg5[%c0_9, %c0_10] : memref<1x128xf32, #tpu.memory_space<vmem>>, vector<1x128xf32>
    %13 = vector.broadcast %12 : vector<1x128xf32> to vector<128x128xf32>
    %14 = arith.addf %11, %13 : vector<128x128xf32>
    %cst_11 = arith.constant 0.000000e+00 : f32
    %15 = vector.broadcast %cst_11 : f32 to vector<128x128xf32>
    %16 = arith.maximumf %14, %15 : vector<128x128xf32>
    %17 = arith.truncf %16 : vector<128x128xf32> to vector<128x128xbf16>
    %c0_12 = arith.constant 0 : index
    %c0_13 = arith.constant 0 : index
    %18 = vector.load %arg6[%c0_12, %c0_13] : memref<128x64xbf16, #tpu.memory_space<vmem>>, vector<128x64xbf16>
    %cst_14 = arith.constant dense<0.000000e+00> : vector<128x64xf32>
    %19 = tpu.matmul %17, %18, %cst_14 {dimension_numbers = #tpu.dot_dimension_numbers<[1], [0], [0], [1], [0, 0, 1, 1], [], []>} : vector<128x128xbf16>, vector<128x64xbf16>, vector<128x64xf32> -> vector<128x64xf32>
    %c0_15 = arith.constant 0 : index
    %c0_16 = arith.constant 0 : index
    %20 = vector.load %arg7[%c0_15, %c0_16] : memref<1x64xf32, #tpu.memory_space<vmem>>, vector<1x64xf32>
    %21 = vector.broadcast %20 : vector<1x64xf32> to vector<128x64xf32>
    %22 = arith.addf %19, %21 : vector<128x64xf32>
    %23 = arith.truncf %22 : vector<128x64xf32> to vector<128x64xbf16>
    %c0_17 = arith.constant 0 : index
    %c0_18 = arith.constant 0 : index
    %24 = vector.load %arg14[%c0_17, %c0_18] : memref<128x64xbf16, #tpu.memory_space<vmem>>, vector<128x64xbf16>
    tpu.vector_store %arg14[%c0_17, %c0_18], %23 {strides = array<i32>} : memref<128x64xbf16, #tpu.memory_space<vmem>>, vector<128x64xbf16>,
    %25 = arith.truncf %22 : vector<128x64xf32> to vector<128x64xbf16>
    %c0_19 = arith.constant 0 : index
    %c0_20 = arith.constant 0 : index
    %26 = vector.load %arg8[%c0_19, %c0_20] : memref<64x128xbf16, #tpu.memory_space<vmem>>, vector<64x128xbf16>
    %cst_21 = arith.constant dense<0.000000e+00> : vector<128x128xf32>
    %27 = tpu.matmul %25, %26, %cst_21 {dimension_numbers = #tpu.dot_dimension_numbers<[1], [0], [0], [1], [0, 0, 1, 1], [], []>} : vector<128x64xbf16>, vector<64x128xbf16>, vector<128x128xf32> -> vector<128x128xf32>
    %c0_22 = arith.constant 0 : index
    %c0_23 = arith.constant 0 : index
    %28 = vector.load %arg9[%c0_22, %c0_23] : memref<1x128xf32, #tpu.memory_space<vmem>>, vector<1x128xf32>
    %29 = vector.broadcast %28 : vector<1x128xf32> to vector<128x128xf32>
    %30 = arith.addf %27, %29 : vector<128x128xf32>
    %cst_24 = arith.constant 0.000000e+00 : f32
    %31 = vector.broadcast %cst_24 : f32 to vector<128x128xf32>
    %32 = arith.maximumf %30, %31 : vector<128x128xf32>
    %33 = arith.truncf %32 : vector<128x128xf32> to vector<128x128xbf16>
    %c0_25 = arith.constant 0 : index
    %c0_26 = arith.constant 0 : index
    %34 = vector.load %arg10[%c0_25, %c0_26] : memref<128x256xbf16, #tpu.memory_space<vmem>>, vector<128x256xbf16>
    %cst_27 = arith.constant dense<0.000000e+00> : vector<128x256xf32>
    %35 = tpu.matmul %33, %34, %cst_27 {dimension_numbers = #tpu.dot_dimension_numbers<[1], [0], [0], [1], [0, 0, 1, 1], [], []>} : vector<128x128xbf16>, vector<128x256xbf16>, vector<128x256xf32> -> vector<128x256xf32>
    %c0_28 = arith.constant 0 : index
    %c0_29 = arith.constant 0 : index
    %36 = vector.load %arg11[%c0_28, %c0_29] : memref<1x256xf32, #tpu.memory_space<vmem>>, vector<1x256xf32>
    %37 = vector.broadcast %36 : vector<1x256xf32> to vector<128x256xf32>
    %38 = arith.addf %35, %37 : vector<128x256xf32>
    %cst_30 = arith.constant 0.000000e+00 : f32
    %39 = vector.broadcast %cst_30 : f32 to vector<128x256xf32>
    %40 = arith.maximumf %38, %39 : vector<128x256xf32>
    %41 = arith.truncf %40 : vector<128x256xf32> to vector<128x256xbf16>
    %c0_31 = arith.constant 0 : index
    %c0_32 = arith.constant 0 : index
    %42 = vector.load %arg12[%c0_31, %c0_32] : memref<256x100xbf16, #tpu.memory_space<vmem>>, vector<256x100xbf16>
    %cst_33 = arith.constant dense<0.000000e+00> : vector<128x100xf32>
    %43 = tpu.matmul %41, %42, %cst_33 {dimension_numbers = #tpu.dot_dimension_numbers<[1], [0], [0], [1], [0, 0, 1, 1], [], []>} : vector<128x256xbf16>, vector<256x100xbf16>, vector<128x100xf32> -> vector<128x100xf32>
    %c0_34 = arith.constant 0 : index
    %c0_35 = arith.constant 0 : index
    %44 = vector.load %arg13[%c0_34, %c0_35] : memref<1x100xf32, #tpu.memory_space<vmem>>, vector<1x100xf32>
    %45 = vector.broadcast %44 : vector<1x100xf32> to vector<128x100xf32>
    %46 = arith.addf %43, %45 : vector<128x100xf32>
    %47 = arith.truncf %46 : vector<128x100xf32> to vector<128x100xbf16>
    %c0_36 = arith.constant 0 : index
    %c0_37 = arith.constant 0 : index
    %48 = vector.load %arg15[%c0_36, %c0_37] : memref<128x100xbf16, #tpu.memory_space<vmem>>, vector<128x100xbf16>
    tpu.vector_store %arg15[%c0_36, %c0_37], %47 {strides = array<i32>} : memref<128x100xbf16, #tpu.memory_space<vmem>>, vector<128x100xbf16>,
    return
  }
  func.func @transform_0(%arg0: i32) -> (i32, i32) {
    %c0_i32 = arith.constant 0 : i32
    %c0_i32_0 = arith.constant 0 : i32
    return %arg0, %c0_i32 : i32, i32
  }
  func.func @transform_1(%arg0: i32) -> (i32, i32) {
    %c0_i32 = arith.constant 0 : i32
    %c0_i32_0 = arith.constant 0 : i32
    %c0_i32_1 = arith.constant 0 : i32
    return %c0_i32, %c0_i32_0 : i32, i32
  }
  func.func @transform_2(%arg0: i32) -> (i32, i32) {
    %c0_i32 = arith.constant 0 : i32
    %c0_i32_0 = arith.constant 0 : i32
    %c0_i32_1 = arith.constant 0 : i32
    return %c0_i32, %c0_i32_0 : i32, i32
  }
  func.func @transform_3(%arg0: i32) -> (i32, i32) {
    %c0_i32 = arith.constant 0 : i32
    %c0_i32_0 = arith.constant 0 : i32
    %c0_i32_1 = arith.constant 0 : i32
    return %c0_i32, %c0_i32_0 : i32, i32
  }
  func.func @transform_4(%arg0: i32) -> (i32, i32) {
    %c0_i32 = arith.constant 0 : i32
    %c0_i32_0 = arith.constant 0 : i32
    %c0_i32_1 = arith.constant 0 : i32
    return %c0_i32, %c0_i32_0 : i32, i32
  }
  func.func @transform_5(%arg0: i32) -> (i32, i32) {
    %c0_i32 = arith.constant 0 : i32
    %c0_i32_0 = arith.constant 0 : i32
    %c0_i32_1 = arith.constant 0 : i32
    return %c0_i32, %c0_i32_0 : i32, i32
  }
  func.func @transform_6(%arg0: i32) -> (i32, i32) {
    %c0_i32 = arith.constant 0 : i32
    %c0_i32_0 = arith.constant 0 : i32
    %c0_i32_1 = arith.constant 0 : i32
    return %c0_i32, %c0_i32_0 : i32, i32
  }
  func.func @transform_7(%arg0: i32) -> (i32, i32) {
    %c0_i32 = arith.constant 0 : i32
    %c0_i32_0 = arith.constant 0 : i32
    %c0_i32_1 = arith.constant 0 : i32
    return %c0_i32, %c0_i32_0 : i32, i32
  }
  func.func @transform_8(%arg0: i32) -> (i32, i32) {
    %c0_i32 = arith.constant 0 : i32
    %c0_i32_0 = arith.constant 0 : i32
    %c0_i32_1 = arith.constant 0 : i32
    return %c0_i32, %c0_i32_0 : i32, i32
  }
  func.func @transform_9(%arg0: i32) -> (i32, i32) {
    %c0_i32 = arith.constant 0 : i32
    %c0_i32_0 = arith.constant 0 : i32
    %c0_i32_1 = arith.constant 0 : i32
    return %c0_i32, %c0_i32_0 : i32, i32
  }
  func.func @transform_10(%arg0: i32) -> (i32, i32) {
    %c0_i32 = arith.constant 0 : i32
    %c0_i32_0 = arith.constant 0 : i32
    %c0_i32_1 = arith.constant 0 : i32
    return %c0_i32, %c0_i32_0 : i32, i32
  }
  func.func @transform_11(%arg0: i32) -> (i32, i32) {
    %c0_i32 = arith.constant 0 : i32
    %c0_i32_0 = arith.constant 0 : i32
    %c0_i32_1 = arith.constant 0 : i32
    return %c0_i32, %c0_i32_0 : i32, i32
  }
  func.func @transform_12(%arg0: i32) -> (i32, i32) {
    %c0_i32 = arith.constant 0 : i32
    %c0_i32_0 = arith.constant 0 : i32
    %c0_i32_1 = arith.constant 0 : i32
    return %c0_i32, %c0_i32_0 : i32, i32
  }
  func.func @transform_13(%arg0: i32) -> (i32, i32) {
    %c0_i32 = arith.constant 0 : i32
    %c0_i32_0 = arith.constant 0 : i32
    return %arg0, %c0_i32 : i32, i32
  }
  func.func @transform_14(%arg0: i32) -> (i32, i32) {
    %c0_i32 = arith.constant 0 : i32
    %c0_i32_0 = arith.constant 0 : i32
    return %arg0, %c0_i32 : i32, i32
  }
}

</mosaic_0001>

<llo_original>
// kernel: model_embedder_forward.1
$region0: #{model_embedder_forward.1}
  #allocation0 [shape = 'u32[]', space=smem, size = 0x4, offset = 0x4, fixed_abs, tag = 'smem constant byte address 0x4 - core index']
  #allocation1 [shape = 'u32[144,128]{1,0:T(1,128)}', space=vmem, size = 0x12000, scoped, tag = 'internal scratch']
  %s0 = inlined_call_operand.vmem [shape: f32[200,100], index: 0, kind: input, shape index: {}]
  %s1 = inlined_call_operand.vmem [shape: bf16[100,256], index: 1, kind: input, shape index: {}]
  %s2 = inlined_call_operand.vmem [shape: f32[1,256], index: 2, kind: input, shape index: {}]
  %s3 = inlined_call_operand.vmem [shape: bf16[256,128], index: 3, kind: input, shape index: {}]
  %s4 = inlined_call_operand.vmem [shape: f32[1,128], index: 4, kind: input, shape index: {}]
  %s5 = inlined_call_operand.vmem [shape: bf16[128,64], index: 5, kind: input, shape index: {}]
  %s6 = inlined_call_operand.vmem [shape: f32[1,64], index: 6, kind: input, shape index: {}]
  %s7 = inlined_call_operand.vmem [shape: bf16[64,128], index: 7, kind: input, shape index: {}]
  %s8 = inlined_call_operand.vmem [shape: f32[1,128], index: 8, kind: input, shape index: {}]
  %s9 = inlined_call_operand.vmem [shape: bf16[128,256], index: 9, kind: input, shape index: {}]
  %s10 = inlined_call_operand.vmem [shape: f32[1,256], index: 10, kind: input, shape index: {}]
  %s11 = inlined_call_operand.vmem [shape: bf16[256,100], index: 11, kind: input, shape index: {}]
  %s12 = inlined_call_operand.vmem [shape: f32[1,100], index: 12, kind: input, shape index: {}]
  %s13 = inlined_call_operand.vmem [shape: bf16[200,64], index: 13, kind: output, shape index: {0}]
  %s14 = inlined_call_operand.hbm [shape: bf16[200,100], index: 14, kind: output, shape index: {1}]
  %15 = xla_tuple %s13, %s14
  %s16 = sld [smem:[#allocation0]]
  $region137: #{model_embedder_forward.1} parent=0
    _
  %s18 = ssub.s32 1, %s16
  %s19 = scalar_select 0, %s18, %s16
  $region1: #{model_embedder_forward.1} parent=0
    #allocation2 [shape = 'u8[65536]{0}', space=vmem, size = 0x10000, scoped, tag = 'output window, operand 0']
    #allocation3 [shape = 'u8[65536]{0}', space=vmem, size = 0x10000, scoped, tag = 'output window, operand 1']
    #allocation4 [shape = 's32[2]{0}', space=sflag, size = 0x8, scoped, tag = 'scoped memory for model_embedder_forward.1']
    %20 = vsyncpa [#allocation4], 0
    %s21 = scalar_lea.sflag [#allocation4], 1
    %22 = vsyncpa %s21, 0
    loop: start=0, step=1, limit=4
    $region2: #{model_embedder_forward.1} parent=1 // loop_pre_header
      _
    $region3: #{model_embedder_forward.1} parent=1 // loop_header
      %s24 = sphi 0, %s28
      %p25 = scmp.ge.s32.totalorder %s24, 4
      %s34 = sphi 0, %s36
      %s37 = sphi 0, %s34
      %s38 = sphi 0, %s37
      %s54 = sphi 0, %s38
      %s58 = sphi 0, %s58
      %s60 = sphi 0, %s58
      %s61 = sphi 0, %s60
      %s75 = sphi 0, %s61
      %s79 = sphi 0, %s79
      %s81 = sphi 0, %s79
      %s82 = sphi 0, %s81
      %s96 = sphi 0, %s82
      %s100 = sphi 0, %s100
      %s102 = sphi 0, %s100
      %s103 = sphi 0, %s102
      %s117 = sphi 0, %s103
      %s121 = sphi 0, %s121
      %s123 = sphi 0, %s121
      %s124 = sphi 0, %s123
      %s138 = sphi 0, %s124
      %s142 = sphi 0, %s142
      %s144 = sphi 0, %s142
      %s145 = sphi 0, %s144
      %s159 = sphi 0, %s145
      %s163 = sphi 0, %s163
      %s165 = sphi 0, %s163
      %s166 = sphi 0, %s165
      %s180 = sphi 0, %s166
      %s184 = sphi 0, %s184
      %s186 = sphi 0, %s184
      %s187 = sphi 0, %s186
      %s201 = sphi 0, %s187
      %s205 = sphi 0, %s205
      %s207 = sphi 0, %s205
      %s208 = sphi 0, %s207
      %s222 = sphi 0, %s208
      %s226 = sphi 0, %s226
      %s228 = sphi 0, %s226
      %s229 = sphi 0, %s228
      %s243 = sphi 0, %s229
      %s247 = sphi 0, %s247
      %s249 = sphi 0, %s247
      %s250 = sphi 0, %s249
      %s264 = sphi 0, %s250
      %s268 = sphi 0, %s268
      %s270 = sphi 0, %s268
      %s271 = sphi 0, %s270
      %s285 = sphi 0, %s271
      %s289 = sphi 0, %s289
      %s291 = sphi 0, %s289
      %s292 = sphi 0, %s291
      %s306 = sphi 0, %s292
      %s312 = sphi 0, %s314
      %s315 = sphi 0, %s312
      %s316 = sphi 0, %s315
      %s332 = sphi 0, %s316
      %s338 = sphi 0, %s340
      %s341 = sphi 0, %s338
      %s342 = sphi 0, %s341
      %s358 = sphi 0, %s342
    $region4: #{model_embedder_forward.1} parent=1 // loop_header_branch
      %27 = sbr.rel (%p25) target = $region8
    $region5: #{model_embedder_forward.1} parent=1 // loop_body
      %s29 = ssub.s32 %s24, 1
      %s30 = ssub.s32 %s24, 2
      %s31 = sadd.s32 %s24, 1
      %s32 = ssub.s32 %s24, %s31
      %p33 = scmp.eq.s32.totalorder %s32, 0
      %s35 = sadd.s32 %s34, 1
      %s36 = scalar_select %p33, %s34, %s35
      %p39 = pneg %p33
      %p40 = scmp.eq.s32.totalorder %s24, 1
      %p41 = por %p39, %p40
      %p42 = scmp.ne.s32.totalorder %s34, %s37
      %p43 = scmp.eq.s32.totalorder %s24, 0
      %p44 = por %p42, %p43
      %p45 = scmp.ne.s32.totalorder %s34, %s37
      %p46 = scmp.eq.s32.totalorder %s29, 1
      %p47 = por %p45, %p46
      %p48 = scmp.ne.s32.totalorder %s37, %s38
      %p49 = scmp.eq.s32.totalorder %s29, 0
      %p50 = por %p48, %p49
      %p51 = scmp.ne.s32.totalorder %s37, %s38
      %p52 = scmp.eq.s32.totalorder %s30, 1
      %p53 = por %p51, %p52
      %p55 = scmp.ne.s32.totalorder %s38, %s54
      %p56 = scmp.eq.s32.totalorder %s30, 0
      %p57 = por %p55, %p56
      %s59 = sadd.s32 %s58, 1
      %p62 = scmp.eq.s32.totalorder %s24, 1
      %p63 = scmp.ne.s32.totalorder %s58, %s60
      %p64 = scmp.eq.s32.totalorder %s24, 0
      %p65 = por %p63, %p64
      %p66 = scmp.ne.s32.totalorder %s58, %s60
      %p67 = scmp.eq.s32.totalorder %s29, 1
      %p68 = por %p66, %p67
      %p69 = scmp.ne.s32.totalorder %s60, %s61
      %p70 = scmp.eq.s32.totalorder %s29, 0
      %p71 = por %p69, %p70
      %p72 = scmp.ne.s32.totalorder %s60, %s61
      %p73 = scmp.eq.s32.totalorder %s30, 1
      %p74 = por %p72, %p73
      %p76 = scmp.ne.s32.totalorder %s61, %s75
      %p77 = scmp.eq.s32.totalorder %s30, 0
      %p78 = por %p76, %p77
      %s80 = sadd.s32 %s79, 1
      %p83 = scmp.eq.s32.totalorder %s24, 1
      %p84 = scmp.ne.s32.totalorder %s79, %s81
      %p85 = scmp.eq.s32.totalorder %s24, 0
      %p86 = por %p84, %p85
      %p87 = scmp.ne.s32.totalorder %s79, %s81
      %p88 = scmp.eq.s32.totalorder %s29, 1
      %p89 = por %p87, %p88
      %p90 = scmp.ne.s32.totalorder %s81, %s82
      %p91 = scmp.eq.s32.totalorder %s29, 0
      %p92 = por %p90, %p91
      %p93 = scmp.ne.s32.totalorder %s81, %s82
      %p94 = scmp.eq.s32.totalorder %s30, 1
      %p95 = por %p93, %p94
      %p97 = scmp.ne.s32.totalorder %s82, %s96
      %p98 = scmp.eq.s32.totalorder %s30, 0
      %p99 = por %p97, %p98
      %s101 = sadd.s32 %s100, 1
      %p104 = scmp.eq.s32.totalorder %s24, 1
      %p105 = scmp.ne.s32.totalorder %s100, %s102
      %p106 = scmp.eq.s32.totalorder %s24, 0
      %p107 = por %p105, %p106
      %p108 = scmp.ne.s32.totalorder %s100, %s102
      %p109 = scmp.eq.s32.totalorder %s29, 1
      %p110 = por %p108, %p109
      %p111 = scmp.ne.s32.totalorder %s102, %s103
      %p112 = scmp.eq.s32.totalorder %s29, 0
      %p113 = por %p111, %p112
      %p114 = scmp.ne.s32.totalorder %s102, %s103
      %p115 = scmp.eq.s32.totalorder %s30, 1
      %p116 = por %p114, %p115
      %p118 = scmp.ne.s32.totalorder %s103, %s117
      %p119 = scmp.eq.s32.totalorder %s30, 0
      %p120 = por %p118, %p119
      %s122 = sadd.s32 %s121, 1
      %p125 = scmp.eq.s32.totalorder %s24, 1
      %p126 = scmp.ne.s32.totalorder %s121, %s123
      %p127 = scmp.eq.s32.totalorder %s24, 0
      %p128 = por %p126, %p127
      %p129 = scmp.ne.s32.totalorder %s121, %s123
      %p130 = scmp.eq.s32.totalorder %s29, 1
      %p131 = por %p129, %p130
      %p132 = scmp.ne.s32.totalorder %s123, %s124
      %p133 = scmp.eq.s32.totalorder %s29, 0
      %p134 = por %p132, %p133
      %p135 = scmp.ne.s32.totalorder %s123, %s124
      %p136 = scmp.eq.s32.totalorder %s30, 1
      %p137 = por %p135, %p136
      %p139 = scmp.ne.s32.totalorder %s124, %s138
      %p140 = scmp.eq.s32.totalorder %s30, 0
      %p141 = por %p139, %p140
      %s143 = sadd.s32 %s142, 1
      %p146 = scmp.eq.s32.totalorder %s24, 1
      %p147 = scmp.ne.s32.totalorder %s142, %s144
      %p148 = scmp.eq.s32.totalorder %s24, 0
      %p149 = por %p147, %p148
      %p150 = scmp.ne.s32.totalorder %s142, %s144
      %p151 = scmp.eq.s32.totalorder %s29, 1
      %p152 = por %p150, %p151
      %p153 = scmp.ne.s32.totalorder %s144, %s145
      %p154 = scmp.eq.s32.totalorder %s29, 0
      %p155 = por %p153, %p154
      %p156 = scmp.ne.s32.totalorder %s144, %s145
      %p157 = scmp.eq.s32.totalorder %s30, 1
      %p158 = por %p156, %p157
      %p160 = scmp.ne.s32.totalorder %s145, %s159
      %p161 = scmp.eq.s32.totalorder %s30, 0
      %p162 = por %p160, %p161
      %s164 = sadd.s32 %s163, 1
      %p167 = scmp.eq.s32.totalorder %s24, 1
      %p168 = scmp.ne.s32.totalorder %s163, %s165
      %p169 = scmp.eq.s32.totalorder %s24, 0
      %p170 = por %p168, %p169
      %p171 = scmp.ne.s32.totalorder %s163, %s165
      %p172 = scmp.eq.s32.totalorder %s29, 1
      %p173 = por %p171, %p172
      %p174 = scmp.ne.s32.totalorder %s165, %s166
      %p175 = scmp.eq.s32.totalorder %s29, 0
      %p176 = por %p174, %p175
      %p177 = scmp.ne.s32.totalorder %s165, %s166
      %p178 = scmp.eq.s32.totalorder %s30, 1
      %p179 = por %p177, %p178
      %p181 = scmp.ne.s32.totalorder %s166, %s180
      %p182 = scmp.eq.s32.totalorder %s30, 0
      %p183 = por %p181, %p182
      %s185 = sadd.s32 %s184, 1
      %p188 = scmp.eq.s32.totalorder %s24, 1
      %p189 = scmp.ne.s32.totalorder %s184, %s186
      %p190 = scmp.eq.s32.totalorder %s24, 0
      %p191 = por %p189, %p190
      %p192 = scmp.ne.s32.totalorder %s184, %s186
      %p193 = scmp.eq.s32.totalorder %s29, 1
      %p194 = por %p192, %p193
      %p195 = scmp.ne.s32.totalorder %s186, %s187
      %p196 = scmp.eq.s32.totalorder %s29, 0
      %p197 = por %p195, %p196
      %p198 = scmp.ne.s32.totalorder %s186, %s187
      %p199 = scmp.eq.s32.totalorder %s30, 1
      %p200 = por %p198, %p199
      %p202 = scmp.ne.s32.totalorder %s187, %s201
      %p203 = scmp.eq.s32.totalorder %s30, 0
      %p204 = por %p202, %p203
      %s206 = sadd.s32 %s205, 1
      %p209 = scmp.eq.s32.totalorder %s24, 1
      %p210 = scmp.ne.s32.totalorder %s205, %s207
      %p211 = scmp.eq.s32.totalorder %s24, 0
      %p212 = por %p210, %p211
      %p213 = scmp.ne.s32.totalorder %s205, %s207
      %p214 = scmp.eq.s32.totalorder %s29, 1
      %p215 = por %p213, %p214
      %p216 = scmp.ne.s32.totalorder %s207, %s208
      %p217 = scmp.eq.s32.totalorder %s29, 0
      %p218 = por %p216, %p217
      %p219 = scmp.ne.s32.totalorder %s207, %s208
      %p220 = scmp.eq.s32.totalorder %s30, 1
      %p221 = por %p219, %p220
      %p223 = scmp.ne.s32.totalorder %s208, %s222
      %p224 = scmp.eq.s32.totalorder %s30, 0
      %p225 = por %p223, %p224
      %s227 = sadd.s32 %s226, 1
      %p230 = scmp.eq.s32.totalorder %s24, 1
      %p231 = scmp.ne.s32.totalorder %s226, %s228
      %p232 = scmp.eq.s32.totalorder %s24, 0
      %p233 = por %p231, %p232
      %p234 = scmp.ne.s32.totalorder %s226, %s228
      %p235 = scmp.eq.s32.totalorder %s29, 1
      %p236 = por %p234, %p235
      %p237 = scmp.ne.s32.totalorder %s228, %s229
      %p238 = scmp.eq.s32.totalorder %s29, 0
      %p239 = por %p237, %p238
      %p240 = scmp.ne.s32.totalorder %s228, %s229
      %p241 = scmp.eq.s32.totalorder %s30, 1
      %p242 = por %p240, %p241
      %p244 = scmp.ne.s32.totalorder %s229, %s243
      %p245 = scmp.eq.s32.totalorder %s30, 0
      %p246 = por %p244, %p245
      %s248 = sadd.s32 %s247, 1
      %p251 = scmp.eq.s32.totalorder %s24, 1
      %p252 = scmp.ne.s32.totalorder %s247, %s249
      %p253 = scmp.eq.s32.totalorder %s24, 0
      %p254 = por %p252, %p253
      %p255 = scmp.ne.s32.totalorder %s247, %s249
      %p256 = scmp.eq.s32.totalorder %s29, 1
      %p257 = por %p255, %p256
      %p258 = scmp.ne.s32.totalorder %s249, %s250
      %p259 = scmp.eq.s32.totalorder %s29, 0
      %p260 = por %p258, %p259
      %p261 = scmp.ne.s32.totalorder %s249, %s250
      %p262 = scmp.eq.s32.totalorder %s30, 1
      %p263 = por %p261, %p262
      %p265 = scmp.ne.s32.totalorder %s250, %s264
      %p266 = scmp.eq.s32.totalorder %s30, 0
      %p267 = por %p265, %p266
      %s269 = sadd.s32 %s268, 1
      %p272 = scmp.eq.s32.totalorder %s24, 1
      %p273 = scmp.ne.s32.totalorder %s268, %s270
      %p274 = scmp.eq.s32.totalorder %s24, 0
      %p275 = por %p273, %p274
      %p276 = scmp.ne.s32.totalorder %s268, %s270
      %p277 = scmp.eq.s32.totalorder %s29, 1
      %p278 = por %p276, %p277
      %p279 = scmp.ne.s32.totalorder %s270, %s271
      %p280 = scmp.eq.s32.totalorder %s29, 0
      %p281 = por %p279, %p280
      %p282 = scmp.ne.s32.totalorder %s270, %s271
      %p283 = scmp.eq.s32.totalorder %s30, 1
      %p284 = por %p282, %p283
      %p286 = scmp.ne.s32.totalorder %s271, %s285
      %p287 = scmp.eq.s32.totalorder %s30, 0
      %p288 = por %p286, %p287
      %s290 = sadd.s32 %s289, 1
      %p293 = scmp.eq.s32.totalorder %s24, 1
      %p294 = scmp.ne.s32.totalorder %s289, %s291
      %p295 = scmp.eq.s32.totalorder %s24, 0
      %p296 = por %p294, %p295
      %p297 = scmp.ne.s32.totalorder %s289, %s291
      %p298 = scmp.eq.s32.totalorder %s29, 1
      %p299 = por %p297, %p298
      %p300 = scmp.ne.s32.totalorder %s291, %s292
      %p301 = scmp.eq.s32.totalorder %s29, 0
      %p302 = por %p300, %p301
      %p303 = scmp.ne.s32.totalorder %s291, %s292
      %p304 = scmp.eq.s32.totalorder %s30, 1
      %p305 = por %p303, %p304
      %p307 = scmp.ne.s32.totalorder %s292, %s306
      %p308 = scmp.eq.s32.totalorder %s30, 0
      %p309 = por %p307, %p308
      %s310 = ssub.s32 %s24, %s31
      %p311 = scmp.eq.s32.totalorder %s310, 0
      %s313 = sadd.s32 %s312, 1
      %s314 = scalar_select %p311, %s312, %s313
      %p317 = pneg %p311
      %p318 = scmp.eq.s32.totalorder %s24, 1
      %p319 = por %p317, %p318
      %p320 = scmp.ne.s32.totalorder %s312, %s315
      %p321 = scmp.eq.s32.totalorder %s24, 0
      %p322 = por %p320, %p321
      %p323 = scmp.ne.s32.totalorder %s312, %s315
      %p324 = scmp.eq.s32.totalorder %s29, 1
      %p325 = por %p323, %p324
      %p326 = scmp.ne.s32.totalorder %s315, %s316
      %p327 = scmp.eq.s32.totalorder %s29, 0
      %p328 = por %p326, %p327
      %p329 = scmp.ne.s32.totalorder %s315, %s316
      %p330 = scmp.eq.s32.totalorder %s30, 1
      %p331 = por %p329, %p330
      %p333 = scmp.ne.s32.totalorder %s316, %s332
      %p334 = scmp.eq.s32.totalorder %s30, 0
      %p335 = por %p333, %p334
      %s336 = ssub.s32 %s24, %s31
      %p337 = scmp.eq.s32.totalorder %s336, 0
      %s339 = sadd.s32 %s338, 1
      %s340 = scalar_select %p337, %s338, %s339
      %p343 = pneg %p337
      %p344 = scmp.eq.s32.totalorder %s24, 1
      %p345 = por %p343, %p344
      %p346 = scmp.ne.s32.totalorder %s338, %s341
      %p347 = scmp.eq.s32.totalorder %s24, 0
      %p348 = por %p346, %p347
      %p349 = scmp.ne.s32.totalorder %s338, %s341
      %p350 = scmp.eq.s32.totalorder %s29, 1
      %p351 = por %p349, %p350
      %p352 = scmp.ne.s32.totalorder %s341, %s342
      %p353 = scmp.eq.s32.totalorder %s29, 0
      %p354 = por %p352, %p353
      %p355 = scmp.ne.s32.totalorder %s341, %s342
      %p356 = scmp.eq.s32.totalorder %s30, 1
      %p357 = por %p355, %p356
      %p359 = scmp.ne.s32.totalorder %s342, %s358
      %p360 = scmp.eq.s32.totalorder %s30, 0
      %p361 = por %p359, %p360
      %p362 = scmp.le.s32.totalorder 1, %s24
      %p363 = scmp.lt.s32.totalorder %s24, 3
      %p364 = pnand %p362, %p363
      %p365 = pneg %p364
      // Predicated region
      $region9: #{model_embedder_forward.1} parent=5 // pred_check
        _
      $region10: #{model_embedder_forward.1} parent=5 // pred_check_branch
        %367 = sbr.rel (%p364) target = $region12
      $region11: #{model_embedder_forward.1} parent=5 // pred_region
        %s368 = ssub.s32 %s24, 1
        // Predicated region
        $region13: #{model_embedder_forward.1} parent=11 // pred_check
          %p369 = pneg %p71
        $region14: #{model_embedder_forward.1} parent=11 // pred_check_branch
          %371 = sbr.rel (%p369) target = $region16
        $region15: #{model_embedder_forward.1} parent=11 // pred_region
          _
        $region16: #{model_embedder_forward.1} parent=11 // pred_fallthru
          _
        // Predicated region
        $region17: #{model_embedder_forward.1} parent=11 // pred_check
          %p372 = pneg %p92
        $region18: #{model_embedder_forward.1} parent=11 // pred_check_branch
          %374 = sbr.rel (%p372) target = $region20
        $region19: #{model_embedder_forward.1} parent=11 // pred_region
          _
        $region20: #{model_embedder_forward.1} parent=11 // pred_fallthru
          _
        // Predicated region
        $region21: #{model_embedder_forward.1} parent=11 // pred_check
          %p375 = pneg %p113
        $region22: #{model_embedder_forward.1} parent=11 // pred_check_branch
          %377 = sbr.rel (%p375) target = $region24
        $region23: #{model_embedder_forward.1} parent=11 // pred_region
          _
        $region24: #{model_embedder_forward.1} parent=11 // pred_fallthru
          _
        // Predicated region
        $region25: #{model_embedder_forward.1} parent=11 // pred_check
          %p378 = pneg %p134
        $region26: #{model_embedder_forward.1} parent=11 // pred_check_branch
          %380 = sbr.rel (%p378) target = $region28
        $region27: #{model_embedder_forward.1} parent=11 // pred_region
          _
        $region28: #{model_embedder_forward.1} parent=11 // pred_fallthru
          _
        // Predicated region
        $region29: #{model_embedder_forward.1} parent=11 // pred_check
          %p381 = pneg %p155
        $region30: #{model_embedder_forward.1} parent=11 // pred_check_branch
          %383 = sbr.rel (%p381) target = $region32
        $region31: #{model_embedder_forward.1} parent=11 // pred_region
          _
        $region32: #{model_embedder_forward.1} parent=11 // pred_fallthru
          _
        // Predicated region
        $region33: #{model_embedder_forward.1} parent=11 // pred_check
          %p384 = pneg %p176
        $region34: #{model_embedder_forward.1} parent=11 // pred_check_branch
          %386 = sbr.rel (%p384) target = $region36
        $region35: #{model_embedder_forward.1} parent=11 // pred_region
          _
        $region36: #{model_embedder_forward.1} parent=11 // pred_fallthru
          _
        // Predicated region
        $region37: #{model_embedder_forward.1} parent=11 // pred_check
          %p387 = pneg %p197
        $region38: #{model_embedder_forward.1} parent=11 // pred_check_branch
          %389 = sbr.rel (%p387) target = $region40
        $region39: #{model_embedder_forward.1} parent=11 // pred_region
          _
        $region40: #{model_embedder_forward.1} parent=11 // pred_fallthru
          _
        // Predicated region
        $region41: #{model_embedder_forward.1} parent=11 // pred_check
          %p390 = pneg %p218
        $region42: #{model_embedder_forward.1} parent=11 // pred_check_branch
          %392 = sbr.rel (%p390) target = $region44
        $region43: #{model_embedder_forward.1} parent=11 // pred_region
          _
        $region44: #{model_embedder_forward.1} parent=11 // pred_fallthru
          _
        // Predicated region
        $region45: #{model_embedder_forward.1} parent=11 // pred_check
          %p393 = pneg %p239
        $region46: #{model_embedder_forward.1} parent=11 // pred_check_branch
          %395 = sbr.rel (%p393) target = $region48
        $region47: #{model_embedder_forward.1} parent=11 // pred_region
          _
        $region48: #{model_embedder_forward.1} parent=11 // pred_fallthru
          _
        // Predicated region
        $region49: #{model_embedder_forward.1} parent=11 // pred_check
          %p396 = pneg %p260
        $region50: #{model_embedder_forward.1} parent=11 // pred_check_branch
          %398 = sbr.rel (%p396) target = $region52
        $region51: #{model_embedder_forward.1} parent=11 // pred_region
          _
        $region52: #{model_embedder_forward.1} parent=11 // pred_fallthru
          _
        // Predicated region
        $region53: #{model_embedder_forward.1} parent=11 // pred_check
          %p399 = pneg %p281
        $region54: #{model_embedder_forward.1} parent=11 // pred_check_branch
          %401 = sbr.rel (%p399) target = $region56
        $region55: #{model_embedder_forward.1} parent=11 // pred_region
          _
        $region56: #{model_embedder_forward.1} parent=11 // pred_fallthru
          _
        // Predicated region
        $region57: #{model_embedder_forward.1} parent=11 // pred_check
          %p402 = pneg %p302
        $region58: #{model_embedder_forward.1} parent=11 // pred_check_branch
          %404 = sbr.rel (%p402) target = $region60
        $region59: #{model_embedder_forward.1} parent=11 // pred_region
          _
        $region60: #{model_embedder_forward.1} parent=11 // pred_fallthru
          _
      $region12: #{model_embedder_forward.1} parent=5 // pred_fallthru
        _
      %p405 = scmp.lt.s32.totalorder %s24, 2
      // Predicated region
      $region61: #{model_embedder_forward.1} parent=5 // pred_check
        %p406 = pneg %p405
      $region62: #{model_embedder_forward.1} parent=5 // pred_check_branch
        %408 = sbr.rel (%p406) target = $region64
      $region63: #{model_embedder_forward.1} parent=5 // pred_region
        // Predicated region
        $region65: #{model_embedder_forward.1} parent=63 // pred_check
          %p409 = pneg %p44
        $region66: #{model_embedder_forward.1} parent=63 // pred_check_branch
          %411 = sbr.rel (%p409) target = $region68
        $region67: #{model_embedder_forward.1} parent=63 // pred_region
          %s412 = smul.u32 16, %s24
          %s413 = ssub.s32 25, %s412
          %p414 = scmp.lt.s32.totalorder %s413, 16
          %s415 = scalar_select %p414, %s413, 16
          %s416 = smul.u32 128, %s415
          %p417 = scmp.lt.s32.totalorder %s412, 24
          %s418 = scalar_select %p417, %s412, 24
          %s419 = smul.addr %s418, 8
          %s420 = scalar_lea.vmem %s0, %s419
          %s421 = smul.u32 16, %s24
          %s422 = ssub.s32 25, %s421
          %p423 = scmp.lt.s32.totalorder %s422, 16
          %s424 = scalar_select %p423, %s422, 16
          %s425 = smul.u32 128, %s424
        $region68: #{model_embedder_forward.1} parent=63 // pred_fallthru
          _
      $region64: #{model_embedder_forward.1} parent=5 // pred_fallthru
        _
      %p426 = scmp.le.s32.totalorder 1, %s24
      %p427 = scmp.lt.s32.totalorder %s24, 3
      %p428 = pnand %p426, %p427
      %p429 = pneg %p428
      // Predicated region
      $region69: #{model_embedder_forward.1} parent=5 // pred_check
        _
      $region70: #{model_embedder_forward.1} parent=5 // pred_check_branch
        %431 = sbr.rel (%p428) target = $region72
      $region71: #{model_embedder_forward.1} parent=5 // pred_region
        %s432 = ssub.s32 %s24, 1
        %s433 = smul.u32 16, %s29
        %s434 = ssub.s32 25, %s433
        %p435 = scmp.lt.s32.totalorder %s434, 16
        %s436 = scalar_select %p435, %s434, 16
        %s437 = smul.u32 128, %s436
        %p438 = scmp.lt.s32.totalorder %s433, 24
        %s439 = scalar_select %p438, %s433, 24
        %s440 = smul.addr %s439, 8
        %s441 = scalar_lea.vmem %s0, %s440
        %p442 = pneg %p50
        %p443 = pneg %p47
        %p444 = pneg %p71
        %p445 = pneg %p68
        %p446 = pneg %p92
        %p447 = pneg %p89
        %p448 = pneg %p113
        %p449 = pneg %p110
        %p450 = pneg %p134
        %p451 = pneg %p131
        %p452 = pneg %p155
        %p453 = pneg %p152
        %p454 = pneg %p176
        %p455 = pneg %p173
        %p456 = pneg %p197
        %p457 = pneg %p194
        %p458 = pneg %p218
        %p459 = pneg %p215
        %p460 = pneg %p239
        %p461 = pneg %p236
        %p462 = pneg %p260
        %p463 = pneg %p257
        %p464 = pneg %p281
        %p465 = pneg %p278
        %p466 = pneg %p302
        %p467 = pneg %p299
        %p468 = pneg %p328
        %p469 = pneg %p325
        %s470 = sand.u32 %s315, 1
        %s471 = sand.u32 %s315, 1
        %s472 = smul.addr %s471, 64
        %s473 = scalar_lea.vmem [#allocation2], %s472
        %p474 = pneg %p354
        %p475 = pneg %p351
        %s476 = sand.u32 %s341, 1
        %s477 = scalar_lea.sflag [#allocation4], %s476
        %s478 = sand.u32 %s341, 1
        %s479 = smul.addr %s478, 64
        %s480 = scalar_lea.vmem [#allocation3], %s479
        %s481 = smul.u32 16, %s29
        %s482 = ssub.s32 25, %s481
        %p483 = scmp.lt.s32.totalorder %s482, 16
        %s484 = scalar_select %p483, %s482, 16
        %s485 = smul.u32 128, %s484
        %p486 = scmp.lt.s32.totalorder %s481, 24
        %s487 = scalar_select %p486, %s481, 24
        %s488 = smul.addr %s487, 8
        %s489 = scalar_lea.vmem %s0, %s488
        %s490 = smul.u32 16, %s29
        %s491 = ssub.s32 25, %s490
        %p492 = scmp.lt.s32.totalorder %s491, 16
        %s493 = scalar_select %p492, %s491, 16
        %s494 = smul.u32 128, %s493
        %s495 = smul.u32 16, %s29
        %s496 = ssub.s32 25, %s495
        %p497 = scmp.lt.s32.totalorder %s496, 16
        %s498 = scalar_select %p497, %s496, 16
        %s499 = smul.u32 64, %s498
        %s500 = smul.u32 16, %s29
        %s501 = ssub.s32 25, %s500
        %p502 = scmp.lt.s32.totalorder %s501, 16
        %s503 = scalar_select %p502, %s501, 16
        %s504 = smul.u32 64, %s503
        %v506 = vld [vmem:[%s489] sm:$0xff]
        %v507 = vld [vmem:[%s489 + $0x8] sm:$0xff]
        %v508 = vld [vmem:[%s489 + $0x10] sm:$0xff]
        %v509 = vld [vmem:[%s489 + $0x18] sm:$0xff]
        %v510 = vld [vmem:[%s489 + $0x20] sm:$0xff]
        %v511 = vld [vmem:[%s489 + $0x28] sm:$0xff]
        %v512 = vld [vmem:[%s489 + $0x30] sm:$0xff]
        %v513 = vld [vmem:[%s489 + $0x38] sm:$0xff]
        %v514 = vld [vmem:[%s489 + $0x40] sm:$0xff]
        %v515 = vld [vmem:[%s489 + $0x48] sm:$0xff]
        %v516 = vld [vmem:[%s489 + $0x50] sm:$0xff]
        %v517 = vld [vmem:[%s489 + $0x58] sm:$0xff]
        %v518 = vld [vmem:[%s489 + $0x60] sm:$0xff]
        %v519 = vld [vmem:[%s489 + $0x68] sm:$0xff]
        %v520 = vld [vmem:[%s489 + $0x70] sm:$0xff]
        %v521 = vld [vmem:[%s489 + $0x78] sm:$0xff]
        %v522 = vpack.c.bf16 %v507, %v506
        %v523 = vpack.c.bf16 %v509, %v508
        %v524 = vpack.c.bf16 %v511, %v510
        %v525 = vpack.c.bf16 %v513, %v512
        %v526 = vpack.c.bf16 %v515, %v514
        %v527 = vpack.c.bf16 %v517, %v516
        %v528 = vpack.c.bf16 %v519, %v518
        %v529 = vpack.c.bf16 %v521, %v520
        %v530 = vld [vmem:[%s1] sm:$0xff]
        %v531 = vld [vmem:[%s1 + $0x8] sm:$0xff]
        %v532 = vld [vmem:[%s1 + $0x10] sm:$0xff]
        %v533 = vld [vmem:[%s1 + $0x18] sm:$0xff]
        %v534 = vld [vmem:[%s1 + $0x20] sm:$0xff]
        %v535 = vld [vmem:[%s1 + $0x28] sm:$0xff]
        %v536 = vld [vmem:[%s1 + $0x30] sm:$0xff]
        %v537 = vld [vmem:[%s1 + $0x38] sm:$0xff]
        %v538 = vld [vmem:[%s1 + $0x40] sm:$0xff]
        %v539 = vld [vmem:[%s1 + $0x48] sm:$0xff]
        %v540 = vld [vmem:[%s1 + $0x50] sm:$0xff]
        %v541 = vld [vmem:[%s1 + $0x58] sm:$0xff]
        %v542 = vld [vmem:[%s1 + $0x60] sm:$0x33]
        %v543 = vld [vmem:[%s2] sm:$0x3]
        %v545 = vlaneseq
        %v546 = vshrl.u32 %v545, 7
        %v547 = vsub.s32 0, %v546
        %v548 = vrot.slane %v543, %v547
        %v549 = vlaneseq
        %v550 = vshrl.u32 %v549, 7
        %v551 = vsub.s32 1, %v550
        %v552 = vrot.slane %v543, %v551
        %v568 = vunpack.c.l.b16 %v530
        %v569 = vunpack.c.h.b16 %v530
        %v570 = vunpack.c.l.b16 %v531
        %v571 = vunpack.c.h.b16 %v531
        %v572 = vunpack.c.l.b16 %v532
        %v573 = vunpack.c.h.b16 %v532
        %v574 = vunpack.c.l.b16 %v533
        %v575 = vunpack.c.h.b16 %v533
        %v576 = vunpack.c.l.b16 %v534
        %v577 = vunpack.c.h.b16 %v534
        %v578 = vunpack.c.l.b16 %v535
        %v579 = vunpack.c.h.b16 %v535
        %v580 = vunpack.c.l.b16 %v536
        %v581 = vunpack.c.h.b16 %v536
        %v582 = vunpack.c.l.b16 %v537
        %v583 = vunpack.c.h.b16 %v537
        %v584 = vunpack.c.l.b16 %v538
        %v585 = vunpack.c.h.b16 %v538
        %v586 = vunpack.c.l.b16 %v539
        %v587 = vunpack.c.h.b16 %v539
        %v588 = vunpack.c.l.b16 %v540
        %v589 = vunpack.c.h.b16 %v540
        %v590 = vunpack.c.l.b16 %v541
        %v591 = vunpack.c.h.b16 %v541
        %v592 = vunpack.c.l.b16 %v542
        %v593 = vunpack.c.h.b16 %v542
        %v594 = vpack.c.b16 %v570, %v568
        %v595 = vpack.c.b16 %v571, %v569
        %v596 = vpack.c.b16 %v574, %v572
        %v597 = vpack.c.b16 %v575, %v573
        %v598 = vpack.c.b16 %v578, %v576
        %v599 = vpack.c.b16 %v579, %v577
        %v600 = vpack.c.b16 %v582, %v580
        %v601 = vpack.c.b16 %v583, %v581
        %v602 = vpack.c.b16 %v586, %v584
        %v603 = vpack.c.b16 %v587, %v585
        %v604 = vpack.c.b16 %v590, %v588
        %v605 = vpack.c.b16 %v591, %v589
        %v606 = vpack.c.b16 %v592, %v592
        %v607 = vpack.c.b16 %v593, %v593
        %vm620 = vcmask 818176
        %v622 = vsel %vm620, %v522, 0
        %v625 = vsel %vm620, %v523, 0
        %v628 = vsel %vm620, %v524, 0
        %v631 = vsel %vm620, %v525, 0
        %v634 = vsel %vm620, %v526, 0
        %v637 = vsel %vm620, %v527, 0
        %v640 = vsel %vm620, %v528, 0
        %v643 = vsel %vm620, %v529, 0
        %vm645 = vcmask 1041408
        %v647 = vsel %vm645, %v606, 0
        %v650 = vsel %vm645, %v607, 0
        %652 = vmatprep.subr.bf16.mxu0 %v595
        %653 = vmatpush1.bf16.msra.mxu0 %v594
        %654 = vmatprep.subr.bf16.mxu0 %v597
        %655 = vmatpush1.bf16.msra.mxu0 %v596
        %656 = vmatprep.subr.bf16.mxu0 %v599
        %657 = vmatpush1.bf16.msra.mxu0 %v598
        %658 = vmatprep.subr.bf16.mxu0 %v601
        %659 = vmatpush1.bf16.msra.mxu0 %v600
        %660 = vmatprep.subr.bf16.mxu0 %v603
        %661 = vmatpush1.bf16.msra.mxu0 %v602
        %662 = vmatprep.subr.bf16.mxu0 %v605
        %663 = vmatpush1.bf16.msra.mxu0 %v604
        %664 = vmatprep.subr.bf16.mxu0 %v650
        %665 = vmatpush1.bf16.msra.mxu0 %v647
        %666 = vmatprep.subr.bf16.mxu0 0
        %667 = vmatpush1.bf16.msra.mxu0 0
        %668 = vmatprep.subr.bf16.mxu0 0
        %669 = vmatpush1.bf16.msra.mxu0 0
        %670 = vmatprep.subr.bf16.mxu0 0
        %671 = vmatpush1.bf16.msra.mxu0 0
        %672 = vmatprep.subr.bf16.mxu0 0
        %673 = vmatpush1.bf16.msra.mxu0 0
        %674 = vmatprep.subr.bf16.mxu0 0
        %675 = vmatpush1.bf16.msra.mxu0 0
        %676 = vmatprep.subr.bf16.mxu0 0
        %677 = vmatpush1.bf16.msra.mxu0 0
        %678 = vmatprep.subr.bf16.mxu0 0
        %679 = vmatpush1.bf16.msra.mxu0 0
        %680 = vmatprep.subr.bf16.mxu0 0
        %681 = vmatpush1.bf16.msra.mxu0 0
        %682 = vmatprep.subr.bf16.mxu0 0
        %683 = vmatpush1.bf16.msra.mxu0 0
        %684 = vmatprep.mubr.bf16.mxu0 0
        %685 = vmatmul.mubr.bf16.gmra.mrb[0].mxu0 %v622
        %v686 = vpop.f32.mrb[0].mxu0
        %v687 = vadd.f32 %v548, %v686
        %v688 = vpop.f32.mrb[0].mxu0
        %v689 = vadd.f32 %v552, %v688
        %v690 = vpop.f32.mrb[0].mxu0
        %v691 = vadd.f32 %v548, %v690
        %v692 = vpop.f32.mrb[0].mxu0
        %v693 = vadd.f32 %v552, %v692
        %694 = vmatprep.mubr.bf16.mxu0 0
        %695 = vmatmul.mubr.bf16.gmra.mrb[0].mxu0 %v625
        %v696 = vpop.f32.mrb[0].mxu0
        %v697 = vadd.f32 %v548, %v696
        %v698 = vpop.f32.mrb[0].mxu0
        %v699 = vadd.f32 %v552, %v698
        %v700 = vpop.f32.mrb[0].mxu0
        %v701 = vadd.f32 %v548, %v700
        %v702 = vpop.f32.mrb[0].mxu0
        %v703 = vadd.f32 %v552, %v702
        %704 = vmatprep.mubr.bf16.mxu0 0
        %705 = vmatmul.mubr.bf16.gmra.mrb[0].mxu0 %v628
        %v706 = vpop.f32.mrb[0].mxu0
        %v707 = vadd.f32 %v548, %v706
        %v708 = vpop.f32.mrb[0].mxu0
        %v709 = vadd.f32 %v552, %v708
        %v710 = vpop.f32.mrb[0].mxu0
        %v711 = vadd.f32 %v548, %v710
        %v712 = vpop.f32.mrb[0].mxu0
        %v713 = vadd.f32 %v552, %v712
        %714 = vmatprep.mubr.bf16.mxu0 0
        %715 = vmatmul.mubr.bf16.gmra.mrb[0].mxu0 %v631
        %v716 = vpop.f32.mrb[0].mxu0
        %v717 = vadd.f32 %v548, %v716
        %v718 = vpop.f32.mrb[0].mxu0
        %v719 = vadd.f32 %v552, %v718
        %v720 = vpop.f32.mrb[0].mxu0
        %v721 = vadd.f32 %v548, %v720
        %v722 = vpop.f32.mrb[0].mxu0
        %v723 = vadd.f32 %v552, %v722
        %724 = vmatprep.mubr.bf16.mxu0 0
        %725 = vmatmul.mubr.bf16.gmra.mrb[0].mxu0 %v634
        %v726 = vpop.f32.mrb[0].mxu0
        %v727 = vadd.f32 %v548, %v726
        %v728 = vpop.f32.mrb[0].mxu0
        %v729 = vadd.f32 %v552, %v728
        %v730 = vpop.f32.mrb[0].mxu0
        %v731 = vadd.f32 %v548, %v730
        %v732 = vpop.f32.mrb[0].mxu0
        %v733 = vadd.f32 %v552, %v732
        %734 = vmatprep.mubr.bf16.mxu0 0
        %735 = vmatmul.mubr.bf16.gmra.mrb[0].mxu0 %v637
        %v736 = vpop.f32.mrb[0].mxu0
        %v737 = vadd.f32 %v548, %v736
        %v738 = vpop.f32.mrb[0].mxu0
        %v739 = vadd.f32 %v552, %v738
        %v740 = vpop.f32.mrb[0].mxu0
        %v741 = vadd.f32 %v548, %v740
        %v742 = vpop.f32.mrb[0].mxu0
        %v743 = vadd.f32 %v552, %v742
        %744 = vmatprep.mubr.bf16.mxu0 0
        %745 = vmatmul.mubr.bf16.gmra.mrb[0].mxu0 %v640
        %v746 = vpop.f32.mrb[0].mxu0
        %v747 = vadd.f32 %v548, %v746
        %v748 = vpop.f32.mrb[0].mxu0
        %v749 = vadd.f32 %v552, %v748
        %v750 = vpop.f32.mrb[0].mxu0
        %v751 = vadd.f32 %v548, %v750
        %v752 = vpop.f32.mrb[0].mxu0
        %v753 = vadd.f32 %v552, %v752
        %754 = vmatprep.mubr.bf16.mxu0 0
        %755 = vmatmul.mubr.bf16.gmra.mrb[0].mxu0 %v643
        %v756 = vpop.f32.mrb[0].mxu0
        %v757 = vadd.f32 %v548, %v756
        %v758 = vpop.f32.mrb[0].mxu0
        %v759 = vadd.f32 %v552, %v758
        %v760 = vpop.f32.mrb[0].mxu0
        %v761 = vadd.f32 %v548, %v760
        %v762 = vpop.f32.mrb[0].mxu0
        %v763 = vadd.f32 %v552, %v762
        %764 = vdwg.mxu0
        %v765 = vmax.f32 %v687, 0.0
        %v766 = vmax.f32 %v689, 0.0
        %v767 = vmax.f32 %v691, 0.0
        %v768 = vmax.f32 %v693, 0.0
        %v769 = vmax.f32 %v697, 0.0
        %v770 = vmax.f32 %v699, 0.0
        %v771 = vmax.f32 %v701, 0.0
        %v772 = vmax.f32 %v703, 0.0
        %v773 = vmax.f32 %v707, 0.0
        %v774 = vmax.f32 %v709, 0.0
        %v775 = vmax.f32 %v711, 0.0
        %v776 = vmax.f32 %v713, 0.0
        %v777 = vmax.f32 %v717, 0.0
        %v778 = vmax.f32 %v719, 0.0
        %v779 = vmax.f32 %v721, 0.0
        %v780 = vmax.f32 %v723, 0.0
        %v781 = vmax.f32 %v727, 0.0
        %v782 = vmax.f32 %v729, 0.0
        %v783 = vmax.f32 %v731, 0.0
        %v784 = vmax.f32 %v733, 0.0
        %v785 = vmax.f32 %v737, 0.0
        %v786 = vmax.f32 %v739, 0.0
        %v787 = vmax.f32 %v741, 0.0
        %v788 = vmax.f32 %v743, 0.0
        %v789 = vmax.f32 %v747, 0.0
        %v790 = vmax.f32 %v749, 0.0
        %v791 = vmax.f32 %v751, 0.0
        %v792 = vmax.f32 %v753, 0.0
        %v793 = vmax.f32 %v757, 0.0
        %v794 = vmax.f32 %v759, 0.0
        %v795 = vmax.f32 %v761, 0.0
        %v796 = vmax.f32 %v763, 0.0
        %v797 = vpack.c.bf16 %v767, %v765
        %v798 = vpack.c.bf16 %v768, %v766
        %v799 = vpack.c.bf16 %v771, %v769
        %v800 = vpack.c.bf16 %v772, %v770
        %v801 = vpack.c.bf16 %v775, %v773
        %v802 = vpack.c.bf16 %v776, %v774
        %v803 = vpack.c.bf16 %v779, %v777
        %v804 = vpack.c.bf16 %v780, %v778
        %v805 = vpack.c.bf16 %v783, %v781
        %v806 = vpack.c.bf16 %v784, %v782
        %v807 = vpack.c.bf16 %v787, %v785
        %v808 = vpack.c.bf16 %v788, %v786
        %v809 = vpack.c.bf16 %v791, %v789
        %v810 = vpack.c.bf16 %v792, %v790
        %v811 = vpack.c.bf16 %v795, %v793
        %v812 = vpack.c.bf16 %v796, %v794
        %v813 = vld [vmem:[%s3] sm:$0xf]
        %v814 = vld [vmem:[%s3 + $0x4] sm:$0xf]
        %v815 = vld [vmem:[%s3 + $0x8] sm:$0xf]
        %v816 = vld [vmem:[%s3 + $0xc] sm:$0xf]
        %v817 = vld [vmem:[%s3 + $0x10] sm:$0xf]
        %v818 = vld [vmem:[%s3 + $0x14] sm:$0xf]
        %v819 = vld [vmem:[%s3 + $0x18] sm:$0xf]
        %v820 = vld [vmem:[%s3 + $0x1c] sm:$0xf]
        %v821 = vld [vmem:[%s3 + $0x20] sm:$0xf]
        %v822 = vld [vmem:[%s3 + $0x24] sm:$0xf]
        %v823 = vld [vmem:[%s3 + $0x28] sm:$0xf]
        %v824 = vld [vmem:[%s3 + $0x2c] sm:$0xf]
        %v825 = vld [vmem:[%s3 + $0x30] sm:$0xf]
        %v826 = vld [vmem:[%s3 + $0x34] sm:$0xf]
        %v827 = vld [vmem:[%s3 + $0x38] sm:$0xf]
        %v828 = vld [vmem:[%s3 + $0x3c] sm:$0xf]
        %v829 = vld [vmem:[%s3 + $0x40] sm:$0xf]
        %v830 = vld [vmem:[%s3 + $0x44] sm:$0xf]
        %v831 = vld [vmem:[%s3 + $0x48] sm:$0xf]
        %v832 = vld [vmem:[%s3 + $0x4c] sm:$0xf]
        %v833 = vld [vmem:[%s3 + $0x50] sm:$0xf]
        %v834 = vld [vmem:[%s3 + $0x54] sm:$0xf]
        %v835 = vld [vmem:[%s3 + $0x58] sm:$0xf]
        %v836 = vld [vmem:[%s3 + $0x5c] sm:$0xf]
        %v837 = vld [vmem:[%s3 + $0x60] sm:$0xf]
        %v838 = vld [vmem:[%s3 + $0x64] sm:$0xf]
        %v839 = vld [vmem:[%s3 + $0x68] sm:$0xf]
        %v840 = vld [vmem:[%s3 + $0x6c] sm:$0xf]
        %v841 = vld [vmem:[%s3 + $0x70] sm:$0xf]
        %v842 = vld [vmem:[%s3 + $0x74] sm:$0xf]
        %v843 = vld [vmem:[%s3 + $0x78] sm:$0xf]
        %v844 = vld [vmem:[%s3 + $0x7c] sm:$0xf]
        %v845 = vld [vmem:[%s4] sm:$0x1]
        %v847 = vlaneseq
        %v848 = vshrl.u32 %v847, 7
        %v849 = vsub.s32 0, %v848
        %v850 = vrot.slane %v845, %v849
        %v884 = vunpack.c.l.b16 %v813
        %v885 = vunpack.c.l.b16 %v814
        %v886 = vunpack.c.l.b16 %v815
        %v887 = vunpack.c.l.b16 %v816
        %v888 = vunpack.c.l.b16 %v817
        %v889 = vunpack.c.l.b16 %v818
        %v890 = vunpack.c.l.b16 %v819
        %v891 = vunpack.c.l.b16 %v820
        %v892 = vunpack.c.l.b16 %v821
        %v893 = vunpack.c.l.b16 %v822
        %v894 = vunpack.c.l.b16 %v823
        %v895 = vunpack.c.l.b16 %v824
        %v896 = vunpack.c.l.b16 %v825
        %v897 = vunpack.c.l.b16 %v826
        %v898 = vunpack.c.l.b16 %v827
        %v899 = vunpack.c.l.b16 %v828
        %v900 = vunpack.c.l.b16 %v829
        %v901 = vunpack.c.l.b16 %v830
        %v902 = vunpack.c.l.b16 %v831
        %v903 = vunpack.c.l.b16 %v832
        %v904 = vunpack.c.l.b16 %v833
        %v905 = vunpack.c.l.b16 %v834
        %v906 = vunpack.c.l.b16 %v835
        %v907 = vunpack.c.l.b16 %v836
        %v908 = vunpack.c.l.b16 %v837
        %v909 = vunpack.c.l.b16 %v838
        %v910 = vunpack.c.l.b16 %v839
        %v911 = vunpack.c.l.b16 %v840
        %v912 = vunpack.c.l.b16 %v841
        %v913 = vunpack.c.l.b16 %v842
        %v914 = vunpack.c.l.b16 %v843
        %v915 = vunpack.c.l.b16 %v844
        %v916 = vpack.c.b16 %v885, %v884
        %v917 = vpack.c.b16 %v887, %v886
        %v918 = vpack.c.b16 %v889, %v888
        %v919 = vpack.c.b16 %v891, %v890
        %v920 = vpack.c.b16 %v893, %v892
        %v921 = vpack.c.b16 %v895, %v894
        %v922 = vpack.c.b16 %v897, %v896
        %v923 = vpack.c.b16 %v899, %v898
        %v924 = vpack.c.b16 %v901, %v900
        %v925 = vpack.c.b16 %v903, %v902
        %v926 = vpack.c.b16 %v905, %v904
        %v927 = vpack.c.b16 %v907, %v906
        %v928 = vpack.c.b16 %v909, %v908
        %v929 = vpack.c.b16 %v911, %v910
        %v930 = vpack.c.b16 %v913, %v912
        %v931 = vpack.c.b16 %v915, %v914
        %948 = vmatprep.subr.bf16.mxu0 0
        %949 = vmatpush1.bf16.msra.mxu0 %v916
        %950 = vmatprep.subr.bf16.mxu0 0
        %951 = vmatpush1.bf16.msra.mxu0 %v917
        %952 = vmatprep.subr.bf16.mxu0 0
        %953 = vmatpush1.bf16.msra.mxu0 %v918
        %954 = vmatprep.subr.bf16.mxu0 0
        %955 = vmatpush1.bf16.msra.mxu0 %v919
        %956 = vmatprep.subr.bf16.mxu0 0
        %957 = vmatpush1.bf16.msra.mxu0 %v920
        %958 = vmatprep.subr.bf16.mxu0 0
        %959 = vmatpush1.bf16.msra.mxu0 %v921
        %960 = vmatprep.subr.bf16.mxu0 0
        %961 = vmatpush1.bf16.msra.mxu0 %v922
        %962 = vmatprep.subr.bf16.mxu0 0
        %963 = vmatpush1.bf16.msra.mxu0 %v923
        %964 = vmatprep.subr.bf16.mxu0 0
        %965 = vmatpush1.bf16.msra.mxu0 %v924
        %966 = vmatprep.subr.bf16.mxu0 0
        %967 = vmatpush1.bf16.msra.mxu0 %v925
        %968 = vmatprep.subr.bf16.mxu0 0
        %969 = vmatpush1.bf16.msra.mxu0 %v926
        %970 = vmatprep.subr.bf16.mxu0 0
        %971 = vmatpush1.bf16.msra.mxu0 %v927
        %972 = vmatprep.subr.bf16.mxu0 0
        %973 = vmatpush1.bf16.msra.mxu0 %v928
        %974 = vmatprep.subr.bf16.mxu0 0
        %975 = vmatpush1.bf16.msra.mxu0 %v929
        %976 = vmatprep.subr.bf16.mxu0 0
        %977 = vmatpush1.bf16.msra.mxu0 %v930
        %978 = vmatprep.subr.bf16.mxu0 0
        %979 = vmatpush1.bf16.msra.mxu0 %v931
        %980 = vmatprep.mubr.bf16.mxu0 %v798
        %981 = vmatmul.mubr.bf16.gmra.mrb[0].mxu0 %v797
        %v982 = vpop.f32.mrb[0].mxu0
        %v983 = vadd.f32 %v850, %v982
        %v984 = vpop.f32.mrb[0].mxu0
        %v985 = vpop.f32.mrb[0].mxu0
        %v986 = vadd.f32 %v850, %v985
        %v987 = vpop.f32.mrb[0].mxu0
        %988 = vmatprep.mubr.bf16.mxu0 %v800
        %989 = vmatmul.mubr.bf16.gmra.mrb[0].mxu0 %v799
        %v990 = vpop.f32.mrb[0].mxu0
        %v991 = vadd.f32 %v850, %v990
        %v992 = vpop.f32.mrb[0].mxu0
        %v993 = vpop.f32.mrb[0].mxu0
        %v994 = vadd.f32 %v850, %v993
        %v995 = vpop.f32.mrb[0].mxu0
        %996 = vmatprep.mubr.bf16.mxu0 %v802
        %997 = vmatmul.mubr.bf16.gmra.mrb[0].mxu0 %v801
        %v998 = vpop.f32.mrb[0].mxu0
        %v999 = vadd.f32 %v850, %v998
        %v1000 = vpop.f32.mrb[0].mxu0
        %v1001 = vpop.f32.mrb[0].mxu0
        %v1002 = vadd.f32 %v850, %v1001
        %v1003 = vpop.f32.mrb[0].mxu0
        %1004 = vmatprep.mubr.bf16.mxu0 %v804
        %1005 = vmatmul.mubr.bf16.gmra.mrb[0].mxu0 %v803
        %v1006 = vpop.f32.mrb[0].mxu0
        %v1007 = vadd.f32 %v850, %v1006
        %v1008 = vpop.f32.mrb[0].mxu0
        %v1009 = vpop.f32.mrb[0].mxu0
        %v1010 = vadd.f32 %v850, %v1009
        %v1011 = vpop.f32.mrb[0].mxu0
        %1012 = vmatprep.mubr.bf16.mxu0 %v806
        %1013 = vmatmul.mubr.bf16.gmra.mrb[0].mxu0 %v805
        %v1014 = vpop.f32.mrb[0].mxu0
        %v1015 = vadd.f32 %v850, %v1014
        %v1016 = vpop.f32.mrb[0].mxu0
        %v1017 = vpop.f32.mrb[0].mxu0
        %v1018 = vadd.f32 %v850, %v1017
        %v1019 = vpop.f32.mrb[0].mxu0
        %1020 = vmatprep.mubr.bf16.mxu0 %v808
        %1021 = vmatmul.mubr.bf16.gmra.mrb[0].mxu0 %v807
        %v1022 = vpop.f32.mrb[0].mxu0
        %v1023 = vadd.f32 %v850, %v1022
        %v1024 = vpop.f32.mrb[0].mxu0
        %v1025 = vpop.f32.mrb[0].mxu0
        %v1026 = vadd.f32 %v850, %v1025
        %v1027 = vpop.f32.mrb[0].mxu0
        %1028 = vmatprep.mubr.bf16.mxu0 %v810
        %1029 = vmatmul.mubr.bf16.gmra.mrb[0].mxu0 %v809
        %v1030 = vpop.f32.mrb[0].mxu0
        %v1031 = vadd.f32 %v850, %v1030
        %v1032 = vpop.f32.mrb[0].mxu0
        %v1033 = vpop.f32.mrb[0].mxu0
        %v1034 = vadd.f32 %v850, %v1033
        %v1035 = vpop.f32.mrb[0].mxu0
        %1036 = vmatprep.mubr.bf16.mxu0 %v812
        %1037 = vmatmul.mubr.bf16.gmra.mrb[0].mxu0 %v811
        %v1038 = vpop.f32.mrb[0].mxu0
        %v1039 = vadd.f32 %v850, %v1038
        %v1040 = vpop.f32.mrb[0].mxu0
        %v1041 = vpop.f32.mrb[0].mxu0
        %v1042 = vadd.f32 %v850, %v1041
        %v1043 = vpop.f32.mrb[0].mxu0
        %1044 = vdwg.mxu0
        %v1045 = vmax.f32 %v983, 0.0
        %v1046 = vmax.f32 %v986, 0.0
        %v1047 = vmax.f32 %v991, 0.0
        %v1048 = vmax.f32 %v994, 0.0
        %v1049 = vmax.f32 %v999, 0.0
        %v1050 = vmax.f32 %v1002, 0.0
        %v1051 = vmax.f32 %v1007, 0.0
        %v1052 = vmax.f32 %v1010, 0.0
        %v1053 = vmax.f32 %v1015, 0.0
        %v1054 = vmax.f32 %v1018, 0.0
        %v1055 = vmax.f32 %v1023, 0.0
        %v1056 = vmax.f32 %v1026, 0.0
        %v1057 = vmax.f32 %v1031, 0.0
        %v1058 = vmax.f32 %v1034, 0.0
        %v1059 = vmax.f32 %v1039, 0.0
        %v1060 = vmax.f32 %v1042, 0.0
        %v1061 = vpack.c.bf16 %v1046, %v1045
        %v1062 = vpack.c.bf16 %v1048, %v1047
        %v1063 = vpack.c.bf16 %v1050, %v1049
        %v1064 = vpack.c.bf16 %v1052, %v1051
        %v1065 = vpack.c.bf16 %v1054, %v1053
        %v1066 = vpack.c.bf16 %v1056, %v1055
        %v1067 = vpack.c.bf16 %v1058, %v1057
        %v1068 = vpack.c.bf16 %v1060, %v1059
        %v1069 = vld [vmem:[%s5] sm:$0xf]
        %v1070 = vld [vmem:[%s5 + $0x4] sm:$0xf]
        %v1071 = vld [vmem:[%s5 + $0x8] sm:$0xf]
        %v1072 = vld [vmem:[%s5 + $0xc] sm:$0xf]
        %v1073 = vld [vmem:[%s5 + $0x10] sm:$0xf]
        %v1074 = vld [vmem:[%s5 + $0x14] sm:$0xf]
        %v1075 = vld [vmem:[%s5 + $0x18] sm:$0xf]
        %v1076 = vld [vmem:[%s5 + $0x1c] sm:$0xf]
        %v1077 = vld [vmem:[%s5 + $0x20] sm:$0xf]
        %v1078 = vld [vmem:[%s5 + $0x24] sm:$0xf]
        %v1079 = vld [vmem:[%s5 + $0x28] sm:$0xf]
        %v1080 = vld [vmem:[%s5 + $0x2c] sm:$0xf]
        %v1081 = vld [vmem:[%s5 + $0x30] sm:$0xf]
        %v1082 = vld [vmem:[%s5 + $0x34] sm:$0xf]
        %v1083 = vld [vmem:[%s5 + $0x38] sm:$0xf]
        %v1084 = vld [vmem:[%s5 + $0x3c] sm:$0xf]
        %v1085 = vld [vmem:[%s6] sm:$0x1]
        %v1087 = vlaneseq
        %v1088 = vshrl.u32 %v1087, 7
        %v1089 = vsub.s32 0, %v1088
        %v1090 = vrot.slane %v1085, %v1089
        %v1108 = vunpack.c.l.b16 %v1069
        %v1109 = vunpack.c.l.b16 %v1070
        %v1110 = vunpack.c.l.b16 %v1071
        %v1111 = vunpack.c.l.b16 %v1072
        %v1112 = vunpack.c.l.b16 %v1073
        %v1113 = vunpack.c.l.b16 %v1074
        %v1114 = vunpack.c.l.b16 %v1075
        %v1115 = vunpack.c.l.b16 %v1076
        %v1116 = vunpack.c.l.b16 %v1077
        %v1117 = vunpack.c.l.b16 %v1078
        %v1118 = vunpack.c.l.b16 %v1079
        %v1119 = vunpack.c.l.b16 %v1080
        %v1120 = vunpack.c.l.b16 %v1081
        %v1121 = vunpack.c.l.b16 %v1082
        %v1122 = vunpack.c.l.b16 %v1083
        %v1123 = vunpack.c.l.b16 %v1084
        %v1124 = vpack.c.b16 %v1109, %v1108
        %v1125 = vpack.c.b16 %v1111, %v1110
        %v1126 = vpack.c.b16 %v1113, %v1112
        %v1127 = vpack.c.b16 %v1115, %v1114
        %v1128 = vpack.c.b16 %v1117, %v1116
        %v1129 = vpack.c.b16 %v1119, %v1118
        %v1130 = vpack.c.b16 %v1121, %v1120
        %v1131 = vpack.c.b16 %v1123, %v1122
        %1140 = vmatprep.subr.bf16.mxu0 0
        %1141 = vmatpush1.bf16.msra.mxu0 %v1124
        %1142 = vmatprep.subr.bf16.mxu0 0
        %1143 = vmatpush1.bf16.msra.mxu0 %v1125
        %1144 = vmatprep.subr.bf16.mxu0 0
        %1145 = vmatpush1.bf16.msra.mxu0 %v1126
        %1146 = vmatprep.subr.bf16.mxu0 0
        %1147 = vmatpush1.bf16.msra.mxu0 %v1127
        %1148 = vmatprep.subr.bf16.mxu0 0
        %1149 = vmatpush1.bf16.msra.mxu0 %v1128
        %1150 = vmatprep.subr.bf16.mxu0 0
        %1151 = vmatpush1.bf16.msra.mxu0 %v1129
        %1152 = vmatprep.subr.bf16.mxu0 0
        %1153 = vmatpush1.bf16.msra.mxu0 %v1130
        %1154 = vmatprep.subr.bf16.mxu0 0
        %1155 = vmatpush1.bf16.msra.mxu0 %v1131
        %1156 = vmatprep.subr.bf16.mxu0 0
        %1157 = vmatpush1.bf16.msra.mxu0 0
        %1158 = vmatprep.subr.bf16.mxu0 0
        %1159 = vmatpush1.bf16.msra.mxu0 0
        %1160 = vmatprep.subr.bf16.mxu0 0
        %1161 = vmatpush1.bf16.msra.mxu0 0
        %1162 = vmatprep.subr.bf16.mxu0 0
        %1163 = vmatpush1.bf16.msra.mxu0 0
        %1164 = vmatprep.subr.bf16.mxu0 0
        %1165 = vmatpush1.bf16.msra.mxu0 0
        %1166 = vmatprep.subr.bf16.mxu0 0
        %1167 = vmatpush1.bf16.msra.mxu0 0
        %1168 = vmatprep.subr.bf16.mxu0 0
        %1169 = vmatpush1.bf16.msra.mxu0 0
        %1170 = vmatprep.subr.bf16.mxu0 0
        %1171 = vmatpush1.bf16.msra.mxu0 0
        %1172 = vmatprep.mubr.bf16.mxu0 0
        %1173 = vmatmul.mubr.bf16.gmra.mrb[0].mxu0 %v1061
        %v1174 = vpop.f32.mrb[0].mxu0
        %v1175 = vadd.f32 %v1090, %v1174
        %v1176 = vpop.f32.mrb[0].mxu0
        %v1177 = vpop.f32.mrb[0].mxu0
        %v1178 = vadd.f32 %v1090, %v1177
        %v1179 = vpop.f32.mrb[0].mxu0
        %1180 = vmatprep.mubr.bf16.mxu0 0
        %1181 = vmatmul.mubr.bf16.gmra.mrb[0].mxu0 %v1062
        %v1182 = vpop.f32.mrb[0].mxu0
        %v1183 = vadd.f32 %v1090, %v1182
        %v1184 = vpop.f32.mrb[0].mxu0
        %v1185 = vpop.f32.mrb[0].mxu0
        %v1186 = vadd.f32 %v1090, %v1185
        %v1187 = vpop.f32.mrb[0].mxu0
        %1188 = vmatprep.mubr.bf16.mxu0 0
        %1189 = vmatmul.mubr.bf16.gmra.mrb[0].mxu0 %v1063
        %v1190 = vpop.f32.mrb[0].mxu0
        %v1191 = vadd.f32 %v1090, %v1190
        %v1192 = vpop.f32.mrb[0].mxu0
        %v1193 = vpop.f32.mrb[0].mxu0
        %v1194 = vadd.f32 %v1090, %v1193
        %v1195 = vpop.f32.mrb[0].mxu0
        %1196 = vmatprep.mubr.bf16.mxu0 0
        %1197 = vmatmul.mubr.bf16.gmra.mrb[0].mxu0 %v1064
        %v1198 = vpop.f32.mrb[0].mxu0
        %v1199 = vadd.f32 %v1090, %v1198
        %v1200 = vpop.f32.mrb[0].mxu0
        %v1201 = vpop.f32.mrb[0].mxu0
        %v1202 = vadd.f32 %v1090, %v1201
        %v1203 = vpop.f32.mrb[0].mxu0
        %1204 = vmatprep.mubr.bf16.mxu0 0
        %1205 = vmatmul.mubr.bf16.gmra.mrb[0].mxu0 %v1065
        %v1206 = vpop.f32.mrb[0].mxu0
        %v1207 = vadd.f32 %v1090, %v1206
        %v1208 = vpop.f32.mrb[0].mxu0
        %v1209 = vpop.f32.mrb[0].mxu0
        %v1210 = vadd.f32 %v1090, %v1209
        %v1211 = vpop.f32.mrb[0].mxu0
        %1212 = vmatprep.mubr.bf16.mxu0 0
        %1213 = vmatmul.mubr.bf16.gmra.mrb[0].mxu0 %v1066
        %v1214 = vpop.f32.mrb[0].mxu0
        %v1215 = vadd.f32 %v1090, %v1214
        %v1216 = vpop.f32.mrb[0].mxu0
        %v1217 = vpop.f32.mrb[0].mxu0
        %v1218 = vadd.f32 %v1090, %v1217
        %v1219 = vpop.f32.mrb[0].mxu0
        %1220 = vmatprep.mubr.bf16.mxu0 0
        %1221 = vmatmul.mubr.bf16.gmra.mrb[0].mxu0 %v1067
        %v1222 = vpop.f32.mrb[0].mxu0
        %v1223 = vadd.f32 %v1090, %v1222
        %v1224 = vpop.f32.mrb[0].mxu0
        %v1225 = vpop.f32.mrb[0].mxu0
        %v1226 = vadd.f32 %v1090, %v1225
        %v1227 = vpop.f32.mrb[0].mxu0
        %1228 = vmatprep.mubr.bf16.mxu0 0
        %1229 = vmatmul.mubr.bf16.gmra.mrb[0].mxu0 %v1068
        %v1230 = vpop.f32.mrb[0].mxu0
        %v1231 = vadd.f32 %v1090, %v1230
        %v1232 = vpop.f32.mrb[0].mxu0
        %v1233 = vpop.f32.mrb[0].mxu0
        %v1234 = vadd.f32 %v1090, %v1233
        %v1235 = vpop.f32.mrb[0].mxu0
        %1236 = vdwg.mxu0
        %v1237 = vpack.c.bf16 %v1178, %v1175
        %v1238 = vpack.c.bf16 %v1186, %v1183
        %v1239 = vpack.c.bf16 %v1194, %v1191
        %v1240 = vpack.c.bf16 %v1202, %v1199
        %v1241 = vpack.c.bf16 %v1210, %v1207
        %v1242 = vpack.c.bf16 %v1218, %v1215
        %v1243 = vpack.c.bf16 %v1226, %v1223
        %v1244 = vpack.c.bf16 %v1234, %v1231
        %v1253 = vunpack.c.l.b16 %v1237
        %v1254 = vunpack.c.h.b16 %v1237
        %v1255 = vunpack.c.l.b16 %v1238
        %v1256 = vunpack.c.h.b16 %v1238
        %v1257 = vunpack.c.l.b16 %v1239
        %v1258 = vunpack.c.h.b16 %v1239
        %v1259 = vunpack.c.l.b16 %v1240
        %v1260 = vunpack.c.h.b16 %v1240
        %v1261 = vunpack.c.l.b16 %v1241
        %v1262 = vunpack.c.h.b16 %v1241
        %v1263 = vunpack.c.l.b16 %v1242
        %v1264 = vunpack.c.h.b16 %v1242
        %v1265 = vunpack.c.l.b16 %v1243
        %v1266 = vunpack.c.h.b16 %v1243
        %v1267 = vunpack.c.l.b16 %v1244
        %v1268 = vunpack.c.h.b16 %v1244
        %v1269 = vpack.c.b16 %v1253, %v1253
        %v1270 = vpack.c.b16 %v1254, %v1254
        %v1271 = vpack.c.b16 %v1255, %v1255
        %v1272 = vpack.c.b16 %v1256, %v1256
        %v1273 = vpack.c.b16 %v1257, %v1257
        %v1274 = vpack.c.b16 %v1258, %v1258
        %v1275 = vpack.c.b16 %v1259, %v1259
        %v1276 = vpack.c.b16 %v1260, %v1260
        %v1277 = vpack.c.b16 %v1261, %v1261
        %v1278 = vpack.c.b16 %v1262, %v1262
        %v1279 = vpack.c.b16 %v1263, %v1263
        %v1280 = vpack.c.b16 %v1264, %v1264
        %v1281 = vpack.c.b16 %v1265, %v1265
        %v1282 = vpack.c.b16 %v1266, %v1266
        %v1283 = vpack.c.b16 %v1267, %v1267
        %v1284 = vpack.c.b16 %v1268, %v1268
        %vm1301 = vcmask 519168
        %1302 = vst.msk [vmem:[%s473] sm:$0xf] %vm1301, %v1269
        %1303 = vst.msk [vmem:[%s473 + $0x4] sm:$0xf] %vm1301, %v1270
        %1304 = vst.msk [vmem:[%s473 + $0x8] sm:$0xf] %vm1301, %v1271
        %1305 = vst.msk [vmem:[%s473 + $0xc] sm:$0xf] %vm1301, %v1272
        %1306 = vst.msk [vmem:[%s473 + $0x10] sm:$0xf] %vm1301, %v1273
        %1307 = vst.msk [vmem:[%s473 + $0x14] sm:$0xf] %vm1301, %v1274
        %1308 = vst.msk [vmem:[%s473 + $0x18] sm:$0xf] %vm1301, %v1275
        %1309 = vst.msk [vmem:[%s473 + $0x1c] sm:$0xf] %vm1301, %v1276
        %1310 = vst.msk [vmem:[%s473 + $0x20] sm:$0xf] %vm1301, %v1277
        %1311 = vst.msk [vmem:[%s473 + $0x24] sm:$0xf] %vm1301, %v1278
        %1312 = vst.msk [vmem:[%s473 + $0x28] sm:$0xf] %vm1301, %v1279
        %1313 = vst.msk [vmem:[%s473 + $0x2c] sm:$0xf] %vm1301, %v1280
        %1314 = vst.msk [vmem:[%s473 + $0x30] sm:$0xf] %vm1301, %v1281
        %1315 = vst.msk [vmem:[%s473 + $0x34] sm:$0xf] %vm1301, %v1282
        %1316 = vst.msk [vmem:[%s473 + $0x38] sm:$0xf] %vm1301, %v1283
        %1317 = vst.msk [vmem:[%s473 + $0x3c] sm:$0xf] %vm1301, %v1284
        %v1318 = vld [vmem:[%s7] sm:$0xf]
        %v1319 = vld [vmem:[%s7 + $0x4] sm:$0xf]
        %v1320 = vld [vmem:[%s7 + $0x8] sm:$0xf]
        %v1321 = vld [vmem:[%s7 + $0xc] sm:$0xf]
        %v1322 = vld [vmem:[%s7 + $0x10] sm:$0xf]
        %v1323 = vld [vmem:[%s7 + $0x14] sm:$0xf]
        %v1324 = vld [vmem:[%s7 + $0x18] sm:$0xf]
        %v1325 = vld [vmem:[%s7 + $0x1c] sm:$0xf]
        %v1326 = vld [vmem:[%s8] sm:$0x1]
        %v1328 = vlaneseq
        %v1329 = vshrl.u32 %v1328, 7
        %v1330 = vsub.s32 0, %v1329
        %v1331 = vrot.slane %v1326, %v1330
        %v1341 = vunpack.c.l.b16 %v1318
        %v1342 = vunpack.c.l.b16 %v1319
        %v1343 = vunpack.c.l.b16 %v1320
        %v1344 = vunpack.c.l.b16 %v1321
        %v1345 = vunpack.c.l.b16 %v1322
        %v1346 = vunpack.c.l.b16 %v1323
        %v1347 = vunpack.c.l.b16 %v1324
        %v1348 = vunpack.c.l.b16 %v1325
        %v1349 = vpack.c.b16 %v1342, %v1341
        %v1350 = vpack.c.b16 %v1344, %v1343
        %v1351 = vpack.c.b16 %v1346, %v1345
        %v1352 = vpack.c.b16 %v1348, %v1347
        %vm1357 = vcmask 523264
        %v1359 = vsel %vm1357, %v1237, 0
        %v1362 = vsel %vm1357, %v1238, 0
        %v1365 = vsel %vm1357, %v1239, 0
        %v1368 = vsel %vm1357, %v1240, 0
        %v1371 = vsel %vm1357, %v1241, 0
        %v1374 = vsel %vm1357, %v1242, 0
        %v1377 = vsel %vm1357, %v1243, 0
        %v1380 = vsel %vm1357, %v1244, 0
        %1382 = vmatprep.subr.bf16.mxu0 0
        %1383 = vmatpush1.bf16.msra.mxu0 %v1349
        %1384 = vmatprep.subr.bf16.mxu0 0
        %1385 = vmatpush1.bf16.msra.mxu0 %v1350
        %1386 = vmatprep.subr.bf16.mxu0 0
        %1387 = vmatpush1.bf16.msra.mxu0 %v1351
        %1388 = vmatprep.subr.bf16.mxu0 0
        %1389 = vmatpush1.bf16.msra.mxu0 %v1352
        %1390 = vmatprep.subr.bf16.mxu0 0
        %1391 = vmatpush1.bf16.msra.mxu0 0
        %1392 = vmatprep.subr.bf16.mxu0 0
        %1393 = vmatpush1.bf16.msra.mxu0 0
        %1394 = vmatprep.subr.bf16.mxu0 0
        %1395 = vmatpush1.bf16.msra.mxu0 0
        %1396 = vmatprep.subr.bf16.mxu0 0
        %1397 = vmatpush1.bf16.msra.mxu0 0
        %1398 = vmatprep.subr.bf16.mxu0 0
        %1399 = vmatpush1.bf16.msra.mxu0 0
        %1400 = vmatprep.subr.bf16.mxu0 0
        %1401 = vmatpush1.bf16.msra.mxu0 0
        %1402 = vmatprep.subr.bf16.mxu0 0
        %1403 = vmatpush1.bf16.msra.mxu0 0
        %1404 = vmatprep.subr.bf16.mxu0 0
        %1405 = vmatpush1.bf16.msra.mxu0 0
        %1406 = vmatprep.subr.bf16.mxu0 0
        %1407 = vmatpush1.bf16.msra.mxu0 0
        %1408 = vmatprep.subr.bf16.mxu0 0
        %1409 = vmatpush1.bf16.msra.mxu0 0
        %1410 = vmatprep.subr.bf16.mxu0 0
        %1411 = vmatpush1.bf16.msra.mxu0 0
        %1412 = vmatprep.subr.bf16.mxu0 0
        %1413 = vmatpush1.bf16.msra.mxu0 0
        %1414 = vmatprep.mubr.bf16.mxu0 0
        %1415 = vmatmul.mubr.bf16.gmra.mrb[0].mxu0 %v1359
        %v1416 = vpop.f32.mrb[0].mxu0
        %v1417 = vadd.f32 %v1331, %v1416
        %v1418 = vpop.f32.mrb[0].mxu0
        %v1419 = vpop.f32.mrb[0].mxu0
        %v1420 = vadd.f32 %v1331, %v1419
        %v1421 = vpop.f32.mrb[0].mxu0
        %1422 = vmatprep.mubr.bf16.mxu0 0
        %1423 = vmatmul.mubr.bf16.gmra.mrb[0].mxu0 %v1362
        %v1424 = vpop.f32.mrb[0].mxu0
        %v1425 = vadd.f32 %v1331, %v1424
        %v1426 = vpop.f32.mrb[0].mxu0
        %v1427 = vpop.f32.mrb[0].mxu0
        %v1428 = vadd.f32 %v1331, %v1427
        %v1429 = vpop.f32.mrb[0].mxu0
        %1430 = vmatprep.mubr.bf16.mxu0 0
        %1431 = vmatmul.mubr.bf16.gmra.mrb[0].mxu0 %v1365
        %v1432 = vpop.f32.mrb[0].mxu0
        %v1433 = vadd.f32 %v1331, %v1432
        %v1434 = vpop.f32.mrb[0].mxu0
        %v1435 = vpop.f32.mrb[0].mxu0
        %v1436 = vadd.f32 %v1331, %v1435
        %v1437 = vpop.f32.mrb[0].mxu0
        %1438 = vmatprep.mubr.bf16.mxu0 0
        %1439 = vmatmul.mubr.bf16.gmra.mrb[0].mxu0 %v1368
        %v1440 = vpop.f32.mrb[0].mxu0
        %v1441 = vadd.f32 %v1331, %v1440
        %v1442 = vpop.f32.mrb[0].mxu0
        %v1443 = vpop.f32.mrb[0].mxu0
        %v1444 = vadd.f32 %v1331, %v1443
        %v1445 = vpop.f32.mrb[0].mxu0
        %1446 = vmatprep.mubr.bf16.mxu0 0
        %1447 = vmatmul.mubr.bf16.gmra.mrb[0].mxu0 %v1371
        %v1448 = vpop.f32.mrb[0].mxu0
        %v1449 = vadd.f32 %v1331, %v1448
        %v1450 = vpop.f32.mrb[0].mxu0
        %v1451 = vpop.f32.mrb[0].mxu0
        %v1452 = vadd.f32 %v1331, %v1451
        %v1453 = vpop.f32.mrb[0].mxu0
        %1454 = vmatprep.mubr.bf16.mxu0 0
        %1455 = vmatmul.mubr.bf16.gmra.mrb[0].mxu0 %v1374
        %v1456 = vpop.f32.mrb[0].mxu0
        %v1457 = vadd.f32 %v1331, %v1456
        %v1458 = vpop.f32.mrb[0].mxu0
        %v1459 = vpop.f32.mrb[0].mxu0
        %v1460 = vadd.f32 %v1331, %v1459
        %v1461 = vpop.f32.mrb[0].mxu0
        %1462 = vmatprep.mubr.bf16.mxu0 0
        %1463 = vmatmul.mubr.bf16.gmra.mrb[0].mxu0 %v1377
        %v1464 = vpop.f32.mrb[0].mxu0
        %v1465 = vadd.f32 %v1331, %v1464
        %v1466 = vpop.f32.mrb[0].mxu0
        %v1467 = vpop.f32.mrb[0].mxu0
        %v1468 = vadd.f32 %v1331, %v1467
        %v1469 = vpop.f32.mrb[0].mxu0
        %1470 = vmatprep.mubr.bf16.mxu0 0
        %1471 = vmatmul.mubr.bf16.gmra.mrb[0].mxu0 %v1380
        %v1472 = vpop.f32.mrb[0].mxu0
        %v1473 = vadd.f32 %v1331, %v1472
        %v1474 = vpop.f32.mrb[0].mxu0
        %v1475 = vpop.f32.mrb[0].mxu0
        %v1476 = vadd.f32 %v1331, %v1475
        %v1477 = vpop.f32.mrb[0].mxu0
        %1478 = vdwg.mxu0
        %v1479 = vmax.f32 %v1417, 0.0
        %v1480 = vmax.f32 %v1420, 0.0
        %v1481 = vmax.f32 %v1425, 0.0
        %v1482 = vmax.f32 %v1428, 0.0
        %v1483 = vmax.f32 %v1433, 0.0
        %v1484 = vmax.f32 %v1436, 0.0
        %v1485 = vmax.f32 %v1441, 0.0
        %v1486 = vmax.f32 %v1444, 0.0
        %v1487 = vmax.f32 %v1449, 0.0
        %v1488 = vmax.f32 %v1452, 0.0
        %v1489 = vmax.f32 %v1457, 0.0
        %v1490 = vmax.f32 %v1460, 0.0
        %v1491 = vmax.f32 %v1465, 0.0
        %v1492 = vmax.f32 %v1468, 0.0
        %v1493 = vmax.f32 %v1473, 0.0
        %v1494 = vmax.f32 %v1476, 0.0
        %v1495 = vpack.c.bf16 %v1480, %v1479
        %v1496 = vpack.c.bf16 %v1482, %v1481
        %v1497 = vpack.c.bf16 %v1484, %v1483
        %v1498 = vpack.c.bf16 %v1486, %v1485
        %v1499 = vpack.c.bf16 %v1488, %v1487
        %v1500 = vpack.c.bf16 %v1490, %v1489
        %v1501 = vpack.c.bf16 %v1492, %v1491
        %v1502 = vpack.c.bf16 %v1494, %v1493
        %v1503 = vld [vmem:[%s9] sm:$0xff]
        %v1504 = vld [vmem:[%s9 + $0x8] sm:$0xff]
        %v1505 = vld [vmem:[%s9 + $0x10] sm:$0xff]
        %v1506 = vld [vmem:[%s9 + $0x18] sm:$0xff]
        %v1507 = vld [vmem:[%s9 + $0x20] sm:$0xff]
        %v1508 = vld [vmem:[%s9 + $0x28] sm:$0xff]
        %v1509 = vld [vmem:[%s9 + $0x30] sm:$0xff]
        %v1510 = vld [vmem:[%s9 + $0x38] sm:$0xff]
        %v1511 = vld [vmem:[%s9 + $0x40] sm:$0xff]
        %v1512 = vld [vmem:[%s9 + $0x48] sm:$0xff]
        %v1513 = vld [vmem:[%s9 + $0x50] sm:$0xff]
        %v1514 = vld [vmem:[%s9 + $0x58] sm:$0xff]
        %v1515 = vld [vmem:[%s9 + $0x60] sm:$0xff]
        %v1516 = vld [vmem:[%s9 + $0x68] sm:$0xff]
        %v1517 = vld [vmem:[%s9 + $0x70] sm:$0xff]
        %v1518 = vld [vmem:[%s9 + $0x78] sm:$0xff]
        %v1519 = vld [vmem:[%s10] sm:$0x3]
        %v1521 = vlaneseq
        %v1522 = vshrl.u32 %v1521, 7
        %v1523 = vsub.s32 0, %v1522
        %v1524 = vrot.slane %v1519, %v1523
        %v1525 = vlaneseq
        %v1526 = vshrl.u32 %v1525, 7
        %v1527 = vsub.s32 1, %v1526
        %v1528 = vrot.slane %v1519, %v1527
        %v1547 = vunpack.c.l.b16 %v1503
        %v1548 = vunpack.c.h.b16 %v1503
        %v1549 = vunpack.c.l.b16 %v1504
        %v1550 = vunpack.c.h.b16 %v1504
        %v1551 = vunpack.c.l.b16 %v1505
        %v1552 = vunpack.c.h.b16 %v1505
        %v1553 = vunpack.c.l.b16 %v1506
        %v1554 = vunpack.c.h.b16 %v1506
        %v1555 = vunpack.c.l.b16 %v1507
        %v1556 = vunpack.c.h.b16 %v1507
        %v1557 = vunpack.c.l.b16 %v1508
        %v1558 = vunpack.c.h.b16 %v1508
        %v1559 = vunpack.c.l.b16 %v1509
        %v1560 = vunpack.c.h.b16 %v1509
        %v1561 = vunpack.c.l.b16 %v1510
        %v1562 = vunpack.c.h.b16 %v1510
        %v1563 = vunpack.c.l.b16 %v1511
        %v1564 = vunpack.c.h.b16 %v1511
        %v1565 = vunpack.c.l.b16 %v1512
        %v1566 = vunpack.c.h.b16 %v1512
        %v1567 = vunpack.c.l.b16 %v1513
        %v1568 = vunpack.c.h.b16 %v1513
        %v1569 = vunpack.c.l.b16 %v1514
        %v1570 = vunpack.c.h.b16 %v1514
        %v1571 = vunpack.c.l.b16 %v1515
        %v1572 = vunpack.c.h.b16 %v1515
        %v1573 = vunpack.c.l.b16 %v1516
        %v1574 = vunpack.c.h.b16 %v1516
        %v1575 = vunpack.c.l.b16 %v1517
        %v1576 = vunpack.c.h.b16 %v1517
        %v1577 = vunpack.c.l.b16 %v1518
        %v1578 = vunpack.c.h.b16 %v1518
        %v1579 = vpack.c.b16 %v1549, %v1547
        %v1580 = vpack.c.b16 %v1550, %v1548
        %v1581 = vpack.c.b16 %v1553, %v1551
        %v1582 = vpack.c.b16 %v1554, %v1552
        %v1583 = vpack.c.b16 %v1557, %v1555
        %v1584 = vpack.c.b16 %v1558, %v1556
        %v1585 = vpack.c.b16 %v1561, %v1559
        %v1586 = vpack.c.b16 %v1562, %v1560
        %v1587 = vpack.c.b16 %v1565, %v1563
        %v1588 = vpack.c.b16 %v1566, %v1564
        %v1589 = vpack.c.b16 %v1569, %v1567
        %v1590 = vpack.c.b16 %v1570, %v1568
        %v1591 = vpack.c.b16 %v1573, %v1571
        %v1592 = vpack.c.b16 %v1574, %v1572
        %v1593 = vpack.c.b16 %v1577, %v1575
        %v1594 = vpack.c.b16 %v1578, %v1576
        %1611 = vmatprep.subr.bf16.mxu0 %v1580
        %1612 = vmatpush1.bf16.msra.mxu0 %v1579
        %1613 = vmatprep.subr.bf16.mxu0 %v1582
        %1614 = vmatpush1.bf16.msra.mxu0 %v1581
        %1615 = vmatprep.subr.bf16.mxu0 %v1584
        %1616 = vmatpush1.bf16.msra.mxu0 %v1583
        %1617 = vmatprep.subr.bf16.mxu0 %v1586
        %1618 = vmatpush1.bf16.msra.mxu0 %v1585
        %1619 = vmatprep.subr.bf16.mxu0 %v1588
        %1620 = vmatpush1.bf16.msra.mxu0 %v1587
        %1621 = vmatprep.subr.bf16.mxu0 %v1590
        %1622 = vmatpush1.bf16.msra.mxu0 %v1589
        %1623 = vmatprep.subr.bf16.mxu0 %v1592
        %1624 = vmatpush1.bf16.msra.mxu0 %v1591
        %1625 = vmatprep.subr.bf16.mxu0 %v1594
        %1626 = vmatpush1.bf16.msra.mxu0 %v1593
        %1627 = vmatprep.subr.bf16.mxu0 0
        %1628 = vmatpush1.bf16.msra.mxu0 0
        %1629 = vmatprep.subr.bf16.mxu0 0
        %1630 = vmatpush1.bf16.msra.mxu0 0
        %1631 = vmatprep.subr.bf16.mxu0 0
        %1632 = vmatpush1.bf16.msra.mxu0 0
        %1633 = vmatprep.subr.bf16.mxu0 0
        %1634 = vmatpush1.bf16.msra.mxu0 0
        %1635 = vmatprep.subr.bf16.mxu0 0
        %1636 = vmatpush1.bf16.msra.mxu0 0
        %1637 = vmatprep.subr.bf16.mxu0 0
        %1638 = vmatpush1.bf16.msra.mxu0 0
        %1639 = vmatprep.subr.bf16.mxu0 0
        %1640 = vmatpush1.bf16.msra.mxu0 0
        %1641 = vmatprep.subr.bf16.mxu0 0
        %1642 = vmatpush1.bf16.msra.mxu0 0
        %1643 = vmatprep.mubr.bf16.mxu0 0
        %1644 = vmatmul.mubr.bf16.gmra.mrb[0].mxu0 %v1495
        %v1645 = vpop.f32.mrb[0].mxu0
        %v1646 = vadd.f32 %v1524, %v1645
        %v1647 = vpop.f32.mrb[0].mxu0
        %v1648 = vadd.f32 %v1528, %v1647
        %v1649 = vpop.f32.mrb[0].mxu0
        %v1650 = vadd.f32 %v1524, %v1649
        %v1651 = vpop.f32.mrb[0].mxu0
        %v1652 = vadd.f32 %v1528, %v1651
        %1653 = vmatprep.mubr.bf16.mxu0 0
        %1654 = vmatmul.mubr.bf16.gmra.mrb[0].mxu0 %v1496
        %v1655 = vpop.f32.mrb[0].mxu0
        %v1656 = vadd.f32 %v1524, %v1655
        %v1657 = vpop.f32.mrb[0].mxu0
        %v1658 = vadd.f32 %v1528, %v1657
        %v1659 = vpop.f32.mrb[0].mxu0
        %v1660 = vadd.f32 %v1524, %v1659
        %v1661 = vpop.f32.mrb[0].mxu0
        %v1662 = vadd.f32 %v1528, %v1661
        %1663 = vmatprep.mubr.bf16.mxu0 0
        %1664 = vmatmul.mubr.bf16.gmra.mrb[0].mxu0 %v1497
        %v1665 = vpop.f32.mrb[0].mxu0
        %v1666 = vadd.f32 %v1524, %v1665
        %v1667 = vpop.f32.mrb[0].mxu0
        %v1668 = vadd.f32 %v1528, %v1667
        %v1669 = vpop.f32.mrb[0].mxu0
        %v1670 = vadd.f32 %v1524, %v1669
        %v1671 = vpop.f32.mrb[0].mxu0
        %v1672 = vadd.f32 %v1528, %v1671
        %1673 = vmatprep.mubr.bf16.mxu0 0
        %1674 = vmatmul.mubr.bf16.gmra.mrb[0].mxu0 %v1498
        %v1675 = vpop.f32.mrb[0].mxu0
        %v1676 = vadd.f32 %v1524, %v1675
        %v1677 = vpop.f32.mrb[0].mxu0
        %v1678 = vadd.f32 %v1528, %v1677
        %v1679 = vpop.f32.mrb[0].mxu0
        %v1680 = vadd.f32 %v1524, %v1679
        %v1681 = vpop.f32.mrb[0].mxu0
        %v1682 = vadd.f32 %v1528, %v1681
        %1683 = vmatprep.mubr.bf16.mxu0 0
        %1684 = vmatmul.mubr.bf16.gmra.mrb[0].mxu0 %v1499
        %v1685 = vpop.f32.mrb[0].mxu0
        %v1686 = vadd.f32 %v1524, %v1685
        %v1687 = vpop.f32.mrb[0].mxu0
        %v1688 = vadd.f32 %v1528, %v1687
        %v1689 = vpop.f32.mrb[0].mxu0
        %v1690 = vadd.f32 %v1524, %v1689
        %v1691 = vpop.f32.mrb[0].mxu0
        %v1692 = vadd.f32 %v1528, %v1691
        %1693 = vmatprep.mubr.bf16.mxu0 0
        %1694 = vmatmul.mubr.bf16.gmra.mrb[0].mxu0 %v1500
        %v1695 = vpop.f32.mrb[0].mxu0
        %v1696 = vadd.f32 %v1524, %v1695
        %v1697 = vpop.f32.mrb[0].mxu0
        %v1698 = vadd.f32 %v1528, %v1697
        %v1699 = vpop.f32.mrb[0].mxu0
        %v1700 = vadd.f32 %v1524, %v1699
        %v1701 = vpop.f32.mrb[0].mxu0
        %v1702 = vadd.f32 %v1528, %v1701
        %1703 = vmatprep.mubr.bf16.mxu0 0
        %1704 = vmatmul.mubr.bf16.gmra.mrb[0].mxu0 %v1501
        %v1705 = vpop.f32.mrb[0].mxu0
        %v1706 = vadd.f32 %v1524, %v1705
        %v1707 = vpop.f32.mrb[0].mxu0
        %v1708 = vadd.f32 %v1528, %v1707
        %v1709 = vpop.f32.mrb[0].mxu0
        %v1710 = vadd.f32 %v1524, %v1709
        %v1711 = vpop.f32.mrb[0].mxu0
        %v1712 = vadd.f32 %v1528, %v1711
        %1713 = vmatprep.mubr.bf16.mxu0 0
        %1714 = vmatmul.mubr.bf16.gmra.mrb[0].mxu0 %v1502
        %v1715 = vpop.f32.mrb[0].mxu0
        %v1716 = vadd.f32 %v1524, %v1715
        %v1717 = vpop.f32.mrb[0].mxu0
        %v1718 = vadd.f32 %v1528, %v1717
        %v1719 = vpop.f32.mrb[0].mxu0
        %v1720 = vadd.f32 %v1524, %v1719
        %v1721 = vpop.f32.mrb[0].mxu0
        %v1722 = vadd.f32 %v1528, %v1721
        %1723 = vdwg.mxu0
        %v1724 = vmax.f32 %v1646, 0.0
        %v1725 = vmax.f32 %v1648, 0.0
        %v1726 = vmax.f32 %v1650, 0.0
        %v1727 = vmax.f32 %v1652, 0.0
        %v1728 = vmax.f32 %v1656, 0.0
        %v1729 = vmax.f32 %v1658, 0.0
        %v1730 = vmax.f32 %v1660, 0.0
        %v1731 = vmax.f32 %v1662, 0.0
        %v1732 = vmax.f32 %v1666, 0.0
        %v1733 = vmax.f32 %v1668, 0.0
        %v1734 = vmax.f32 %v1670, 0.0
        %v1735 = vmax.f32 %v1672, 0.0
        %v1736 = vmax.f32 %v1676, 0.0
        %v1737 = vmax.f32 %v1678, 0.0
        %v1738 = vmax.f32 %v1680, 0.0
        %v1739 = vmax.f32 %v1682, 0.0
        %v1740 = vmax.f32 %v1686, 0.0
        %v1741 = vmax.f32 %v1688, 0.0
        %v1742 = vmax.f32 %v1690, 0.0
        %v1743 = vmax.f32 %v1692, 0.0
        %v1744 = vmax.f32 %v1696, 0.0
        %v1745 = vmax.f32 %v1698, 0.0
        %v1746 = vmax.f32 %v1700, 0.0
        %v1747 = vmax.f32 %v1702, 0.0
        %v1748 = vmax.f32 %v1706, 0.0
        %v1749 = vmax.f32 %v1708, 0.0
        %v1750 = vmax.f32 %v1710, 0.0
        %v1751 = vmax.f32 %v1712, 0.0
        %v1752 = vmax.f32 %v1716, 0.0
        %v1753 = vmax.f32 %v1718, 0.0
        %v1754 = vmax.f32 %v1720, 0.0
        %v1755 = vmax.f32 %v1722, 0.0
        %v1756 = vpack.c.bf16 %v1726, %v1724
        %v1757 = vpack.c.bf16 %v1727, %v1725
        %v1758 = vpack.c.bf16 %v1730, %v1728
        %v1759 = vpack.c.bf16 %v1731, %v1729
        %v1760 = vpack.c.bf16 %v1734, %v1732
        %v1761 = vpack.c.bf16 %v1735, %v1733
        %v1762 = vpack.c.bf16 %v1738, %v1736
        %v1763 = vpack.c.bf16 %v1739, %v1737
        %v1764 = vpack.c.bf16 %v1742, %v1740
        %v1765 = vpack.c.bf16 %v1743, %v1741
        %v1766 = vpack.c.bf16 %v1746, %v1744
        %v1767 = vpack.c.bf16 %v1747, %v1745
        %v1768 = vpack.c.bf16 %v1750, %v1748
        %v1769 = vpack.c.bf16 %v1751, %v1749
        %v1770 = vpack.c.bf16 %v1754, %v1752
        %v1771 = vpack.c.bf16 %v1755, %v1753
        %v1772 = vld [vmem:[%s11] sm:$0xf]
        %v1773 = vld [vmem:[%s11 + $0x4] sm:$0xf]
        %v1774 = vld [vmem:[%s11 + $0x8] sm:$0xf]
        %v1775 = vld [vmem:[%s11 + $0xc] sm:$0xf]
        %v1776 = vld [vmem:[%s11 + $0x10] sm:$0xf]
        %v1777 = vld [vmem:[%s11 + $0x14] sm:$0xf]
        %v1778 = vld [vmem:[%s11 + $0x18] sm:$0xf]
        %v1779 = vld [vmem:[%s11 + $0x1c] sm:$0xf]
        %v1780 = vld [vmem:[%s11 + $0x20] sm:$0xf]
        %v1781 = vld [vmem:[%s11 + $0x24] sm:$0xf]
        %v1782 = vld [vmem:[%s11 + $0x28] sm:$0xf]
        %v1783 = vld [vmem:[%s11 + $0x2c] sm:$0xf]
        %v1784 = vld [vmem:[%s11 + $0x30] sm:$0xf]
        %v1785 = vld [vmem:[%s11 + $0x34] sm:$0xf]
        %v1786 = vld [vmem:[%s11 + $0x38] sm:$0xf]
        %v1787 = vld [vmem:[%s11 + $0x3c] sm:$0xf]
        %v1788 = vld [vmem:[%s11 + $0x40] sm:$0xf]
        %v1789 = vld [vmem:[%s11 + $0x44] sm:$0xf]
        %v1790 = vld [vmem:[%s11 + $0x48] sm:$0xf]
        %v1791 = vld [vmem:[%s11 + $0x4c] sm:$0xf]
        %v1792 = vld [vmem:[%s11 + $0x50] sm:$0xf]
        %v1793 = vld [vmem:[%s11 + $0x54] sm:$0xf]
        %v1794 = vld [vmem:[%s11 + $0x58] sm:$0xf]
        %v1795 = vld [vmem:[%s11 + $0x5c] sm:$0xf]
        %v1796 = vld [vmem:[%s11 + $0x60] sm:$0xf]
        %v1797 = vld [vmem:[%s11 + $0x64] sm:$0xf]
        %v1798 = vld [vmem:[%s11 + $0x68] sm:$0xf]
        %v1799 = vld [vmem:[%s11 + $0x6c] sm:$0xf]
        %v1800 = vld [vmem:[%s11 + $0x70] sm:$0xf]
        %v1801 = vld [vmem:[%s11 + $0x74] sm:$0xf]
        %v1802 = vld [vmem:[%s11 + $0x78] sm:$0xf]
        %v1803 = vld [vmem:[%s11 + $0x7c] sm:$0xf]
        %v1804 = vld [vmem:[%s12] sm:$0x1]
        %v1806 = vlaneseq
        %v1807 = vshrl.u32 %v1806, 7
        %v1808 = vsub.s32 0, %v1807
        %v1809 = vrot.slane %v1804, %v1808
        %v1843 = vunpack.c.l.b16 %v1772
        %v1844 = vunpack.c.l.b16 %v1773
        %v1845 = vunpack.c.l.b16 %v1774
        %v1846 = vunpack.c.l.b16 %v1775
        %v1847 = vunpack.c.l.b16 %v1776
        %v1848 = vunpack.c.l.b16 %v1777
        %v1849 = vunpack.c.l.b16 %v1778
        %v1850 = vunpack.c.l.b16 %v1779
        %v1851 = vunpack.c.l.b16 %v1780
        %v1852 = vunpack.c.l.b16 %v1781
        %v1853 = vunpack.c.l.b16 %v1782
        %v1854 = vunpack.c.l.b16 %v1783
        %v1855 = vunpack.c.l.b16 %v1784
        %v1856 = vunpack.c.l.b16 %v1785
        %v1857 = vunpack.c.l.b16 %v1786
        %v1858 = vunpack.c.l.b16 %v1787
        %v1859 = vunpack.c.l.b16 %v1788
        %v1860 = vunpack.c.l.b16 %v1789
        %v1861 = vunpack.c.l.b16 %v1790
        %v1862 = vunpack.c.l.b16 %v1791
        %v1863 = vunpack.c.l.b16 %v1792
        %v1864 = vunpack.c.l.b16 %v1793
        %v1865 = vunpack.c.l.b16 %v1794
        %v1866 = vunpack.c.l.b16 %v1795
        %v1867 = vunpack.c.l.b16 %v1796
        %v1868 = vunpack.c.l.b16 %v1797
        %v1869 = vunpack.c.l.b16 %v1798
        %v1870 = vunpack.c.l.b16 %v1799
        %v1871 = vunpack.c.l.b16 %v1800
        %v1872 = vunpack.c.l.b16 %v1801
        %v1873 = vunpack.c.l.b16 %v1802
        %v1874 = vunpack.c.l.b16 %v1803
        %v1875 = vpack.c.b16 %v1844, %v1843
        %v1876 = vpack.c.b16 %v1846, %v1845
        %v1877 = vpack.c.b16 %v1848, %v1847
        %v1878 = vpack.c.b16 %v1850, %v1849
        %v1879 = vpack.c.b16 %v1852, %v1851
        %v1880 = vpack.c.b16 %v1854, %v1853
        %v1881 = vpack.c.b16 %v1856, %v1855
        %v1882 = vpack.c.b16 %v1858, %v1857
        %v1883 = vpack.c.b16 %v1860, %v1859
        %v1884 = vpack.c.b16 %v1862, %v1861
        %v1885 = vpack.c.b16 %v1864, %v1863
        %v1886 = vpack.c.b16 %v1866, %v1865
        %v1887 = vpack.c.b16 %v1868, %v1867
        %v1888 = vpack.c.b16 %v1870, %v1869
        %v1889 = vpack.c.b16 %v1872, %v1871
        %v1890 = vpack.c.b16 %v1874, %v1873
        %1907 = vmatprep.subr.bf16.mxu0 0
        %1908 = vmatpush1.bf16.msra.mxu0 %v1875
        %1909 = vmatprep.subr.bf16.mxu0 0
        %1910 = vmatpush1.bf16.msra.mxu0 %v1876
        %1911 = vmatprep.subr.bf16.mxu0 0
        %1912 = vmatpush1.bf16.msra.mxu0 %v1877
        %1913 = vmatprep.subr.bf16.mxu0 0
        %1914 = vmatpush1.bf16.msra.mxu0 %v1878
        %1915 = vmatprep.subr.bf16.mxu0 0
        %1916 = vmatpush1.bf16.msra.mxu0 %v1879
        %1917 = vmatprep.subr.bf16.mxu0 0
        %1918 = vmatpush1.bf16.msra.mxu0 %v1880
        %1919 = vmatprep.subr.bf16.mxu0 0
        %1920 = vmatpush1.bf16.msra.mxu0 %v1881
        %1921 = vmatprep.subr.bf16.mxu0 0
        %1922 = vmatpush1.bf16.msra.mxu0 %v1882
        %1923 = vmatprep.subr.bf16.mxu0 0
        %1924 = vmatpush1.bf16.msra.mxu0 %v1883
        %1925 = vmatprep.subr.bf16.mxu0 0
        %1926 = vmatpush1.bf16.msra.mxu0 %v1884
        %1927 = vmatprep.subr.bf16.mxu0 0
        %1928 = vmatpush1.bf16.msra.mxu0 %v1885
        %1929 = vmatprep.subr.bf16.mxu0 0
        %1930 = vmatpush1.bf16.msra.mxu0 %v1886
        %1931 = vmatprep.subr.bf16.mxu0 0
        %1932 = vmatpush1.bf16.msra.mxu0 %v1887
        %1933 = vmatprep.subr.bf16.mxu0 0
        %1934 = vmatpush1.bf16.msra.mxu0 %v1888
        %1935 = vmatprep.subr.bf16.mxu0 0
        %1936 = vmatpush1.bf16.msra.mxu0 %v1889
        %1937 = vmatprep.subr.bf16.mxu0 0
        %1938 = vmatpush1.bf16.msra.mxu0 %v1890
        %1939 = vmatprep.mubr.bf16.mxu0 %v1757
        %1940 = vmatmul.mubr.bf16.gmra.mrb[0].mxu0 %v1756
        %v1941 = vpop.f32.mrb[0].mxu0
        %v1942 = vadd.f32 %v1809, %v1941
        %v1943 = vpop.f32.mrb[0].mxu0
        %v1944 = vpop.f32.mrb[0].mxu0
        %v1945 = vadd.f32 %v1809, %v1944
        %v1946 = vpop.f32.mrb[0].mxu0
        %1947 = vmatprep.mubr.bf16.mxu0 %v1759
        %1948 = vmatmul.mubr.bf16.gmra.mrb[0].mxu0 %v1758
        %v1949 = vpop.f32.mrb[0].mxu0
        %v1950 = vadd.f32 %v1809, %v1949
        %v1951 = vpop.f32.mrb[0].mxu0
        %v1952 = vpop.f32.mrb[0].mxu0
        %v1953 = vadd.f32 %v1809, %v1952
        %v1954 = vpop.f32.mrb[0].mxu0
        %1955 = vmatprep.mubr.bf16.mxu0 %v1761
        %1956 = vmatmul.mubr.bf16.gmra.mrb[0].mxu0 %v1760
        %v1957 = vpop.f32.mrb[0].mxu0
        %v1958 = vadd.f32 %v1809, %v1957
        %v1959 = vpop.f32.mrb[0].mxu0
        %v1960 = vpop.f32.mrb[0].mxu0
        %v1961 = vadd.f32 %v1809, %v1960
        %v1962 = vpop.f32.mrb[0].mxu0
        %1963 = vmatprep.mubr.bf16.mxu0 %v1763
        %1964 = vmatmul.mubr.bf16.gmra.mrb[0].mxu0 %v1762
        %v1965 = vpop.f32.mrb[0].mxu0
        %v1966 = vadd.f32 %v1809, %v1965
        %v1967 = vpop.f32.mrb[0].mxu0
        %v1968 = vpop.f32.mrb[0].mxu0
        %v1969 = vadd.f32 %v1809, %v1968
        %v1970 = vpop.f32.mrb[0].mxu0
        %1971 = vmatprep.mubr.bf16.mxu0 %v1765
        %1972 = vmatmul.mubr.bf16.gmra.mrb[0].mxu0 %v1764
        %v1973 = vpop.f32.mrb[0].mxu0
        %v1974 = vadd.f32 %v1809, %v1973
        %v1975 = vpop.f32.mrb[0].mxu0
        %v1976 = vpop.f32.mrb[0].mxu0
        %v1977 = vadd.f32 %v1809, %v1976
        %v1978 = vpop.f32.mrb[0].mxu0
        %1979 = vmatprep.mubr.bf16.mxu0 %v1767
        %1980 = vmatmul.mubr.bf16.gmra.mrb[0].mxu0 %v1766
        %v1981 = vpop.f32.mrb[0].mxu0
        %v1982 = vadd.f32 %v1809, %v1981
        %v1983 = vpop.f32.mrb[0].mxu0
        %v1984 = vpop.f32.mrb[0].mxu0
        %v1985 = vadd.f32 %v1809, %v1984
        %v1986 = vpop.f32.mrb[0].mxu0
        %1987 = vmatprep.mubr.bf16.mxu0 %v1769
        %1988 = vmatmul.mubr.bf16.gmra.mrb[0].mxu0 %v1768
        %v1989 = vpop.f32.mrb[0].mxu0
        %v1990 = vadd.f32 %v1809, %v1989
        %v1991 = vpop.f32.mrb[0].mxu0
        %v1992 = vpop.f32.mrb[0].mxu0
        %v1993 = vadd.f32 %v1809, %v1992
        %v1994 = vpop.f32.mrb[0].mxu0
        %1995 = vmatprep.mubr.bf16.mxu0 %v1771
        %1996 = vmatmul.mubr.bf16.gmra.mrb[0].mxu0 %v1770
        %v1997 = vpop.f32.mrb[0].mxu0
        %v1998 = vadd.f32 %v1809, %v1997
        %v1999 = vpop.f32.mrb[0].mxu0
        %v2000 = vpop.f32.mrb[0].mxu0
        %v2001 = vadd.f32 %v1809, %v2000
        %v2002 = vpop.f32.mrb[0].mxu0
        %2003 = vdwg.mxu0
        %v2004 = vpack.c.bf16 %v1945, %v1942
        %v2005 = vpack.c.bf16 %v1953, %v1950
        %v2006 = vpack.c.bf16 %v1961, %v1958
        %v2007 = vpack.c.bf16 %v1969, %v1966
        %v2008 = vpack.c.bf16 %v1977, %v1974
        %v2009 = vpack.c.bf16 %v1985, %v1982
        %v2010 = vpack.c.bf16 %v1993, %v1990
        %v2011 = vpack.c.bf16 %v2001, %v1998
        %v2020 = vunpack.c.l.b16 %v2004
        %v2021 = vunpack.c.h.b16 %v2004
        %v2022 = vunpack.c.l.b16 %v2005
        %v2023 = vunpack.c.h.b16 %v2005
        %v2024 = vunpack.c.l.b16 %v2006
        %v2025 = vunpack.c.h.b16 %v2006
        %v2026 = vunpack.c.l.b16 %v2007
        %v2027 = vunpack.c.h.b16 %v2007
        %v2028 = vunpack.c.l.b16 %v2008
        %v2029 = vunpack.c.h.b16 %v2008
        %v2030 = vunpack.c.l.b16 %v2009
        %v2031 = vunpack.c.h.b16 %v2009
        %v2032 = vunpack.c.l.b16 %v2010
        %v2033 = vunpack.c.h.b16 %v2010
        %v2034 = vunpack.c.l.b16 %v2011
        %v2035 = vunpack.c.h.b16 %v2011
        %v2036 = vpack.c.b16 %v2020, %v2020
        %v2037 = vpack.c.b16 %v2021, %v2021
        %v2038 = vpack.c.b16 %v2022, %v2022
        %v2039 = vpack.c.b16 %v2023, %v2023
        %v2040 = vpack.c.b16 %v2024, %v2024
        %v2041 = vpack.c.b16 %v2025, %v2025
        %v2042 = vpack.c.b16 %v2026, %v2026
        %v2043 = vpack.c.b16 %v2027, %v2027
        %v2044 = vpack.c.b16 %v2028, %v2028
        %v2045 = vpack.c.b16 %v2029, %v2029
        %v2046 = vpack.c.b16 %v2030, %v2030
        %v2047 = vpack.c.b16 %v2031, %v2031
        %v2048 = vpack.c.b16 %v2032, %v2032
        %v2049 = vpack.c.b16 %v2033, %v2033
        %v2050 = vpack.c.b16 %v2034, %v2034
        %v2051 = vpack.c.b16 %v2035, %v2035
        %vm2068 = vcmask 814080
        %2069 = vst.msk [vmem:[%s480] sm:$0xf] %vm2068, %v2036
        %2070 = vst.msk [vmem:[%s480 + $0x4] sm:$0xf] %vm2068, %v2037
        %2071 = vst.msk [vmem:[%s480 + $0x8] sm:$0xf] %vm2068, %v2038
        %2072 = vst.msk [vmem:[%s480 + $0xc] sm:$0xf] %vm2068, %v2039
        %2073 = vst.msk [vmem:[%s480 + $0x10] sm:$0xf] %vm2068, %v2040
        %2074 = vst.msk [vmem:[%s480 + $0x14] sm:$0xf] %vm2068, %v2041
        %2075 = vst.msk [vmem:[%s480 + $0x18] sm:$0xf] %vm2068, %v2042
        %2076 = vst.msk [vmem:[%s480 + $0x1c] sm:$0xf] %vm2068, %v2043
        %2077 = vst.msk [vmem:[%s480 + $0x20] sm:$0xf] %vm2068, %v2044
        %2078 = vst.msk [vmem:[%s480 + $0x24] sm:$0xf] %vm2068, %v2045
        %2079 = vst.msk [vmem:[%s480 + $0x28] sm:$0xf] %vm2068, %v2046
        %2080 = vst.msk [vmem:[%s480 + $0x2c] sm:$0xf] %vm2068, %v2047
        %2081 = vst.msk [vmem:[%s480 + $0x30] sm:$0xf] %vm2068, %v2048
        %2082 = vst.msk [vmem:[%s480 + $0x34] sm:$0xf] %vm2068, %v2049
        %2083 = vst.msk [vmem:[%s480 + $0x38] sm:$0xf] %vm2068, %v2050
        %2084 = vst.msk [vmem:[%s480 + $0x3c] sm:$0xf] %vm2068, %v2051
        %s2085 = sand.u32 %s315, 1
        %s2086 = sand.u32 %s315, 1
        %s2087 = smul.addr %s2086, 64
        %s2088 = scalar_lea.vmem [#allocation2], %s2087
        %s2089 = sand.u32 %s341, 1
        %s2090 = scalar_lea.sflag [#allocation4], %s2089
        %s2091 = sand.u32 %s341, 1
        %s2092 = smul.addr %s2091, 64
        %s2093 = scalar_lea.vmem [#allocation3], %s2092
        // Predicated region
        $region73: #{model_embedder_forward.1} parent=71 // pred_check
          %p2094 = pneg %p325
        $region74: #{model_embedder_forward.1} parent=71 // pred_check_branch
          %2096 = sbr.rel (%p2094) target = $region76
        $region75: #{model_embedder_forward.1} parent=71 // pred_region
          %s2097 = smul.u32 16, %s29
          %s2098 = ssub.s32 25, %s2097
          %p2099 = scmp.lt.s32.totalorder %s2098, 16
          %s2100 = scalar_select %p2099, %s2098, 16
          %s2101 = smul.u32 64, %s2100
          %p2102 = scmp.ne.s32.totalorder 0, %s2101
          %s2103 = smul.addr %s2097, 4
          %s2104 = scalar_lea.vmem %s13, %s2103
          // Predicated region
          $region77: #{model_embedder_forward.1} parent=75 // pred_check
            %p2105 = pneg %p2102
          $region78: #{model_embedder_forward.1} parent=75 // pred_check_branch
            %2107 = sbr.rel (%p2105) target = $region80
          $region79: #{model_embedder_forward.1} parent=75 // pred_region
            // Predicated region
            $region81: #{model_embedder_forward.1} parent=79 // pred_check
              _
            $region82: #{model_embedder_forward.1} parent=79 // pred_check_branch
              %2109 = sbr.rel target = $region84
            $region83: #{model_embedder_forward.1} parent=79 // pred_region
              // Predicated region
              $region103: #{model_embedder_forward.1} parent=83 // pred_check
                _
              $region104: #{model_embedder_forward.1} parent=83 // pred_check_branch
                %2188 = sbr.rel (0) target = $region106
              $region105: #{model_embedder_forward.1} parent=83 // pred_region
                %s2190 = sshrl.u32 %s2100, 4
                // While loop
                $region107: #{model_embedder_forward.1} parent=105 // loop_pre_header
                  _
                $region108: #{model_embedder_forward.1} parent=105 // loop_header
                  %s2192 = sphi 0, %s2194
                  %p2193 = scmp.ge.s32.totalorder %s2192, %s2190
                  %s2197 = sphi 0, %s2234
                  %s2198 = sphi %s2088, %s2237
                  %s2199 = sphi %s2104, %s2238
                $region109: #{model_embedder_forward.1} parent=105 // loop_header_branch
                  %2196 = sbr.rel (%p2193) target = $region113
                $region110: #{model_embedder_forward.1} parent=105 // loop_body
                  %v2200 = vld [vmem:[%s2198] sm:$0xf]
                  %2201 = vst [vmem:[%s2199] sm:$0xf] %v2200
                  %v2202 = vld [vmem:[%s2198 + $0x4] sm:$0xf]
                  %2203 = vst [vmem:[%s2199 + $0x4] sm:$0xf] %v2202
                  %v2204 = vld [vmem:[%s2198 + $0x8] sm:$0xf]
                  %2205 = vst [vmem:[%s2199 + $0x8] sm:$0xf] %v2204
                  %v2206 = vld [vmem:[%s2198 + $0xc] sm:$0xf]
                  %2207 = vst [vmem:[%s2199 + $0xc] sm:$0xf] %v2206
                  %v2208 = vld [vmem:[%s2198 + $0x10] sm:$0xf]
                  %2209 = vst [vmem:[%s2199 + $0x10] sm:$0xf] %v2208
                  %v2210 = vld [vmem:[%s2198 + $0x14] sm:$0xf]
                  %2211 = vst [vmem:[%s2199 + $0x14] sm:$0xf] %v2210
                  %v2212 = vld [vmem:[%s2198 + $0x18] sm:$0xf]
                  %2213 = vst [vmem:[%s2199 + $0x18] sm:$0xf] %v2212
                  %v2214 = vld [vmem:[%s2198 + $0x1c] sm:$0xf]
                  %2215 = vst [vmem:[%s2199 + $0x1c] sm:$0xf] %v2214
                  %v2216 = vld [vmem:[%s2198 + $0x20] sm:$0xf]
                  %2217 = vst [vmem:[%s2199 + $0x20] sm:$0xf] %v2216
                  %v2218 = vld [vmem:[%s2198 + $0x24] sm:$0xf]
                  %2219 = vst [vmem:[%s2199 + $0x24] sm:$0xf] %v2218
                  %v2220 = vld [vmem:[%s2198 + $0x28] sm:$0xf]
                  %2221 = vst [vmem:[%s2199 + $0x28] sm:$0xf] %v2220
                  %v2222 = vld [vmem:[%s2198 + $0x2c] sm:$0xf]
                  %2223 = vst [vmem:[%s2199 + $0x2c] sm:$0xf] %v2222
                  %v2224 = vld [vmem:[%s2198 + $0x30] sm:$0xf]
                  %2225 = vst [vmem:[%s2199 + $0x30] sm:$0xf] %v2224
                  %v2226 = vld [vmem:[%s2198 + $0x34] sm:$0xf]
                  %2227 = vst [vmem:[%s2199 + $0x34] sm:$0xf] %v2226
                  %v2228 = vld [vmem:[%s2198 + $0x38] sm:$0xf]
                  %2229 = vst [vmem:[%s2199 + $0x38] sm:$0xf] %v2228
                  %v2230 = vld [vmem:[%s2198 + $0x3c] sm:$0xf]
                  %2231 = vst [vmem:[%s2199 + $0x3c] sm:$0xf] %v2230
                  %s2232 = sadd.s32 1, %s2197
                  %p2233 = scmp.ge.s32.totalorder %s2232, %s2190
                  %s2234 = scalar_select %p2233, 0, %s2232
                  %s2235 = smul.u32 %s2234, 64
                  %s2236 = smul.u32 %s2234, 64
                  %s2237 = scalar_lea.vmem %s2088, %s2235 [#allocation2]
                  %s2238 = scalar_lea.vmem %s2104, %s2236
                $region111: #{model_embedder_forward.1} parent=105 // loop_footer
                  %s2194 = sadd.s32 %s2192, 1
                $region112: #{model_embedder_forward.1} parent=105 // loop_footer_branch
                  %2191 = sbr.rel target = $region108
                $region113: #{model_embedder_forward.1} parent=105 // loop_exit
                  _
                %s2239 = sshrl.u32 %s2100, 4
                %s2240 = sand.u32 %s2100, 15
                %s2241 = smul.u32 %s2239, 16
                %s2242 = smul.u32 4, %s2241
                %s2243 = scalar_lea.vmem %s2088, %s2242 [#allocation2]
                %s2244 = smul.u32 4, %s2241
                %s2245 = scalar_lea.vmem %s2104, %s2244
                // While loop
                $region114: #{model_embedder_forward.1} parent=105 // loop_pre_header
                  _
                $region115: #{model_embedder_forward.1} parent=105 // loop_header
                  %s2247 = sphi 0, %s2249
                  %p2248 = scmp.ge.s32.totalorder %s2247, %s2240
                  %s2252 = sphi 0, %s2259
                  %s2253 = sphi %s2243, %s2262
                  %s2254 = sphi %s2245, %s2263
                $region116: #{model_embedder_forward.1} parent=105 // loop_header_branch
                  %2251 = sbr.rel (%p2248) target = $region120
                $region117: #{model_embedder_forward.1} parent=105 // loop_body
                  %v2255 = vld [vmem:[%s2253] sm:$0xf]
                  %2256 = vst [vmem:[%s2254] sm:$0xf] %v2255
                  %s2257 = sadd.s32 1, %s2252
                  %p2258 = scmp.ge.s32.totalorder %s2257, %s2240
                  %s2259 = scalar_select %p2258, 0, %s2257
                  %s2260 = smul.u32 %s2259, 4
                  %s2261 = smul.u32 %s2259, 4
                  %s2262 = scalar_lea.vmem %s2243, %s2260 [#allocation2]
                  %s2263 = scalar_lea.vmem %s2245, %s2261
                $region118: #{model_embedder_forward.1} parent=105 // loop_footer
                  %s2249 = sadd.s32 %s2247, 1
                $region119: #{model_embedder_forward.1} parent=105 // loop_footer_branch
                  %2246 = sbr.rel target = $region115
                $region120: #{model_embedder_forward.1} parent=105 // loop_exit
                  _
              $region106: #{model_embedder_forward.1} parent=83 // pred_fallthru
                _
            $region84: #{model_embedder_forward.1} parent=79 // pred_fallthru
              _
            // Predicated region
            $region85: #{model_embedder_forward.1} parent=79 // pred_check
              _
            $region86: #{model_embedder_forward.1} parent=79 // pred_check_branch
              %2111 = sbr.rel (0) target = $region88
            $region87: #{model_embedder_forward.1} parent=79 // pred_region
              %s2113 = sshrl.u32 %s2100, 4
              // While loop
              $region89: #{model_embedder_forward.1} parent=87 // loop_pre_header
                _
              $region90: #{model_embedder_forward.1} parent=87 // loop_header
                %s2115 = sphi 0, %s2117
                %p2116 = scmp.ge.s32.totalorder %s2115, %s2113
                %s2120 = sphi 0, %s2157
                %s2121 = sphi %s2088, %s2160
                %s2122 = sphi %s2104, %s2161
              $region91: #{model_embedder_forward.1} parent=87 // loop_header_branch
                %2119 = sbr.rel (%p2116) target = $region95
              $region92: #{model_embedder_forward.1} parent=87 // loop_body
                %v2123 = vld [vmem:[%s2121] sm:$0xf]
                %2124 = vst [vmem:[%s2122] sm:$0xf] %v2123
                %v2125 = vld [vmem:[%s2121 + $0x4] sm:$0xf]
                %2126 = vst [vmem:[%s2122 + $0x4] sm:$0xf] %v2125
                %v2127 = vld [vmem:[%s2121 + $0x8] sm:$0xf]
                %2128 = vst [vmem:[%s2122 + $0x8] sm:$0xf] %v2127
                %v2129 = vld [vmem:[%s2121 + $0xc] sm:$0xf]
                %2130 = vst [vmem:[%s2122 + $0xc] sm:$0xf] %v2129
                %v2131 = vld [vmem:[%s2121 + $0x10] sm:$0xf]
                %2132 = vst [vmem:[%s2122 + $0x10] sm:$0xf] %v2131
                %v2133 = vld [vmem:[%s2121 + $0x14] sm:$0xf]
                %2134 = vst [vmem:[%s2122 + $0x14] sm:$0xf] %v2133
                %v2135 = vld [vmem:[%s2121 + $0x18] sm:$0xf]
                %2136 = vst [vmem:[%s2122 + $0x18] sm:$0xf] %v2135
                %v2137 = vld [vmem:[%s2121 + $0x1c] sm:$0xf]
                %2138 = vst [vmem:[%s2122 + $0x1c] sm:$0xf] %v2137
                %v2139 = vld [vmem:[%s2121 + $0x20] sm:$0xf]
                %2140 = vst [vmem:[%s2122 + $0x20] sm:$0xf] %v2139
                %v2141 = vld [vmem:[%s2121 + $0x24] sm:$0xf]
                %2142 = vst [vmem:[%s2122 + $0x24] sm:$0xf] %v2141
                %v2143 = vld [vmem:[%s2121 + $0x28] sm:$0xf]
                %2144 = vst [vmem:[%s2122 + $0x28] sm:$0xf] %v2143
                %v2145 = vld [vmem:[%s2121 + $0x2c] sm:$0xf]
                %2146 = vst [vmem:[%s2122 + $0x2c] sm:$0xf] %v2145
                %v2147 = vld [vmem:[%s2121 + $0x30] sm:$0xf]
                %2148 = vst [vmem:[%s2122 + $0x30] sm:$0xf] %v2147
                %v2149 = vld [vmem:[%s2121 + $0x34] sm:$0xf]
                %2150 = vst [vmem:[%s2122 + $0x34] sm:$0xf] %v2149
                %v2151 = vld [vmem:[%s2121 + $0x38] sm:$0xf]
                %2152 = vst [vmem:[%s2122 + $0x38] sm:$0xf] %v2151
                %v2153 = vld [vmem:[%s2121 + $0x3c] sm:$0xf]
                %2154 = vst [vmem:[%s2122 + $0x3c] sm:$0xf] %v2153
                %s2155 = sadd.s32 1, %s2120
                %p2156 = scmp.ge.s32.totalorder %s2155, %s2113
                %s2157 = scalar_select %p2156, 0, %s2155
                %s2158 = smul.u32 %s2157, 64
                %s2159 = smul.u32 %s2157, 64
                %s2160 = scalar_lea.vmem %s2088, %s2158 [#allocation2]
                %s2161 = scalar_lea.vmem %s2104, %s2159
              $region93: #{model_embedder_forward.1} parent=87 // loop_footer
                %s2117 = sadd.s32 %s2115, 1
              $region94: #{model_embedder_forward.1} parent=87 // loop_footer_branch
                %2114 = sbr.rel target = $region90
              $region95: #{model_embedder_forward.1} parent=87 // loop_exit
                _
              %s2162 = sshrl.u32 %s2100, 4
              %s2163 = sand.u32 %s2100, 15
              %s2164 = smul.u32 %s2162, 16
              %s2165 = smul.u32 4, %s2164
              %s2166 = scalar_lea.vmem %s2088, %s2165 [#allocation2]
              %s2167 = smul.u32 4, %s2164
              %s2168 = scalar_lea.vmem %s2104, %s2167
              // While loop
              $region96: #{model_embedder_forward.1} parent=87 // loop_pre_header
                _
              $region97: #{model_embedder_forward.1} parent=87 // loop_header
                %s2170 = sphi 0, %s2172
                %p2171 = scmp.ge.s32.totalorder %s2170, %s2163
                %s2175 = sphi 0, %s2182
                %s2176 = sphi %s2166, %s2185
                %s2177 = sphi %s2168, %s2186
              $region98: #{model_embedder_forward.1} parent=87 // loop_header_branch
                %2174 = sbr.rel (%p2171) target = $region102
              $region99: #{model_embedder_forward.1} parent=87 // loop_body
                %v2178 = vld [vmem:[%s2176] sm:$0xf]
                %2179 = vst [vmem:[%s2177] sm:$0xf] %v2178
                %s2180 = sadd.s32 1, %s2175
                %p2181 = scmp.ge.s32.totalorder %s2180, %s2163
                %s2182 = scalar_select %p2181, 0, %s2180
                %s2183 = smul.u32 %s2182, 4
                %s2184 = smul.u32 %s2182, 4
                %s2185 = scalar_lea.vmem %s2166, %s2183 [#allocation2]
                %s2186 = scalar_lea.vmem %s2168, %s2184
              $region100: #{model_embedder_forward.1} parent=87 // loop_footer
                %s2172 = sadd.s32 %s2170, 1
              $region101: #{model_embedder_forward.1} parent=87 // loop_footer_branch
                %2169 = sbr.rel target = $region97
              $region102: #{model_embedder_forward.1} parent=87 // loop_exit
                _
            $region88: #{model_embedder_forward.1} parent=79 // pred_fallthru
              _
          $region80: #{model_embedder_forward.1} parent=75 // pred_fallthru
            _
          %2264 = vnop
        $region76: #{model_embedder_forward.1} parent=71 // pred_fallthru
          _
        // Predicated region
        $region121: #{model_embedder_forward.1} parent=71 // pred_check
          %p2265 = pneg %p351
        $region122: #{model_embedder_forward.1} parent=71 // pred_check_branch
          %2267 = sbr.rel (%p2265) target = $region124
        $region123: #{model_embedder_forward.1} parent=71 // pred_region
          %s2268 = smul.u32 16, %s29
          %s2269 = ssub.s32 25, %s2268
          %p2270 = scmp.lt.s32.totalorder %s2269, 16
          %s2271 = scalar_select %p2270, %s2269, 16
          %s2272 = smul.u32 64, %s2271
          %s2274 = ssub.s32 1024, %s2272
          %2275 = vsyncadd %s2090, %s2274
          %p2276 = scmp.ne.s32.totalorder 0, %s2272
          %s2277 = smul.addr %s2268, 64
          %s2278 = scalar_lea.hbm %s14, %s2277
          %s2279 = smul.u32 4, %s2271
          %s2280 = sshll.u32 %s2093, 4
          %s2281 = int_to_ptr.vmem [resolvable:$true] %s2280
          %s2282 = sshll.u32 %s2279, 4
          %2286 = dma.vmem_to_hbm [thread:$0]  (%p2276), %s2281, %s2282, %s2278, %s2090, 64, 64, 4
        $region124: #{model_embedder_forward.1} parent=71 // pred_fallthru
          _
      $region72: #{model_embedder_forward.1} parent=5 // pred_fallthru
        _
      %p2287 = scmp.le.s32.totalorder 2, %s24
      // Predicated region
      $region125: #{model_embedder_forward.1} parent=5 // pred_check
        %p2288 = pneg %p2287
      $region126: #{model_embedder_forward.1} parent=5 // pred_check_branch
        %2290 = sbr.rel (%p2288) target = $region128
      $region127: #{model_embedder_forward.1} parent=5 // pred_region
        %s2291 = ssub.s32 %s24, 2
        // Predicated region
        $region129: #{model_embedder_forward.1} parent=127 // pred_check
          %p2292 = pneg %p331
        $region130: #{model_embedder_forward.1} parent=127 // pred_check_branch
          %2294 = sbr.rel (%p2292) target = $region132
        $region131: #{model_embedder_forward.1} parent=127 // pred_region
          %s2295 = sand.u32 %s316, 1
          %s2296 = sand.u32 %s316, 1
          %s2297 = smul.addr %s2296, 64
          %s2298 = scalar_lea.vmem [#allocation2], %s2297
        $region132: #{model_embedder_forward.1} parent=127 // pred_fallthru
          _
        // Predicated region
        $region133: #{model_embedder_forward.1} parent=127 // pred_check
          %p2299 = pneg %p357
        $region134: #{model_embedder_forward.1} parent=127 // pred_check_branch
          %2301 = sbr.rel (%p2299) target = $region136
        $region135: #{model_embedder_forward.1} parent=127 // pred_region
          %s2302 = sand.u32 %s342, 1
          %s2303 = scalar_lea.sflag [#allocation4], %s2302
          %s2304 = sand.u32 %s342, 1
          %s2305 = smul.addr %s2304, 64
          %s2306 = scalar_lea.vmem [#allocation3], %s2305
          %2307 = dma.done %s2303, 1024
        $region136: #{model_embedder_forward.1} parent=127 // pred_fallthru
          _
      $region128: #{model_embedder_forward.1} parent=5 // pred_fallthru
        _
    $region6: #{model_embedder_forward.1} parent=1 // loop_footer
      %s28 = sadd.s32 1, %s24
    $region7: #{model_embedder_forward.1} parent=1 // loop_footer_branch
      %23 = sbr.rel target = $region3
    $region8: #{model_embedder_forward.1} parent=1 // loop_exit
      _
    %2308 = vsyncpa [#allocation4], 1
    %s2309 = scalar_lea.sflag [#allocation4], 1
    %2310 = vsyncpa %s2309, 1

</llo_original>
